<compile_context>
chip_gen: v6e
topology: v6e:2x2x1
jax: 0.10.0
libtpu: 0.0.40
codegen_flags: <defaults>
</compile_context>

<pallas_src>
import functools

import jax
import jax.numpy as jnp
from jax.experimental import pallas as pl
from jax.experimental.pallas import tpu as pltpu


def _dice_sums_kernel(logits_ref, labels_ref, inter_ref, psum_ref, tsum_ref):
    """Accumulates per-(batch, channel) intersect / pred_sum / target_sum
    across spatial tiles (grid axis 1), one accumulator block per parallel
    chunk (grid axis 0)."""
    s = pl.program_id(1)

    @pl.when(s == 0)
    def _():
        inter_ref[...] = jnp.zeros_like(inter_ref)
        psum_ref[...] = jnp.zeros_like(psum_ref)
        tsum_ref[...] = jnp.zeros_like(tsum_ref)

    x = logits_ref[...].astype(jnp.float32)   # (B, C, T) in-kernel cast (free)
    lab = labels_ref[...]                     # (B, 1, T) int32, -1 => padding
    B, C, T = x.shape

    # Softmax over the channel axis (independent per spatial location, so
    # chunking over S is exact).
    m = jnp.max(x, axis=1, keepdims=True)
    e = jnp.exp(x - m)
    denom = jnp.sum(e, axis=1, keepdims=True)
    # Reciprocal+multiply keeps the VPU slot free for the reduction math below.
    # (approx=True would be marginally faster but perturbs softmax at ~1e-4.)
    pred = e * pl.reciprocal(denom, approx=False)

    # Rebuild the one-hot mask in-register from the integer labels.
    ch = jax.lax.broadcasted_iota(jnp.int32, (B, C, T), 1)
    onehot = (lab == ch).astype(jnp.float32)          # (B, C, T)
    valid = (lab >= 0).astype(jnp.float32)            # (B, 1, T) masks padding

    inter_ref[...] += jnp.sum(pred * onehot, axis=2)[None]
    psum_ref[...] += jnp.sum(pred * valid, axis=2)[None]
    tsum_ref[...] += jnp.sum(onehot, axis=2)[None]


def _choose_tile(S, max_tile):
    """Largest lane-aligned (128-multiple) spatial tile <= max_tile, preferring
    exact divisors of S so no padding copy is needed."""
    max_tile = max(128, (max_tile // 128) * 128)
    if S <= max_tile:
        return ((S + 127) // 128) * 128
    if S % 128 == 0:
        for t in range(max_tile, 0, -128):
            if S % t == 0:
                return t
    return max_tile


def _dice_sums(logits, labels, *, max_spatial_tile, num_chunks):
    """Pallas launch: per-(batch, channel) intersect / pred_sum / target_sum."""
    B, C = logits.shape[0], logits.shape[1]
    S = 1
    for d in logits.shape[2:]:
        S *= d

    lg = logits.reshape(B, C, S)                      # native dtype, no f32 copy
    lab = labels.reshape(B, S).astype(jnp.int32)

    tile = _choose_tile(S, max_spatial_tile)
    n_tiles = -(-S // tile)
    if n_tiles * tile != S and n_tiles >= num_chunks:
        # Already padding: round to a chunk multiple so the parallel axis
        # (both v7x TensorCores) stays usable.
        n_tiles = -(-n_tiles // num_chunks) * num_chunks
    P = num_chunks if (n_tiles % num_chunks == 0 and n_tiles >= num_chunks) else 1
    steps = n_tiles // P
    S_pad = n_tiles * tile

    if S_pad != S:
        lg = jnp.pad(lg, ((0, 0), (0, 0), (0, S_pad - S)))
        lab = jnp.pad(lab, ((0, 0), (0, S_pad - S)), constant_values=-1)
    lab = lab.reshape(B, 1, S_pad)

    out_shape = tuple(
        jax.ShapeDtypeStruct((P, B, C), jnp.float32) for _ in range(3)
    )
    out_spec = pl.BlockSpec((1, B, C), lambda p, s: (p, 0, 0))

    inter, psum, tsum = pl.pallas_call(
        _dice_sums_kernel,
        out_shape=out_shape,
        grid_spec=pltpu.PrefetchScalarGridSpec(
            num_scalar_prefetch=0,
            grid=(P, steps),
            in_specs=[
                pl.BlockSpec((B, C, tile), lambda p, s: (0, 0, p * steps + s)),
                pl.BlockSpec((B, 1, tile), lambda p, s: (0, 0, p * steps + s)),
            ],
            out_specs=[out_spec, out_spec, out_spec],
        ),
        compiler_params=pltpu.CompilerParams(
            dimension_semantics=("parallel", "arbitrary"),
        ),
    )(lg, lab)

    # Combine the per-chunk partial sums (tiny (P, B, C) glue).
    return inter.sum(axis=0), psum.sum(axis=0), tsum.sum(axis=0)


@functools.partial(
    jax.jit, static_argnames=("eps", "max_spatial_tile", "num_chunks"))
def dice_loss_from_labels(logits, labels, eps=1e-9,
                          max_spatial_tile=32768, num_chunks=2):
    """DiceLoss.forward with the target given as integer class labels
    (B, *spatial).  Efficient path: no one-hot target ever hits HBM."""
    C = logits.shape[1]
    assert C >= 2, "DiceLoss averages dice over channels 1..C-1; needs C >= 2"
    inter, psum, tsum = _dice_sums(
        logits, labels, max_spatial_tile=max_spatial_tile,
        num_chunks=num_chunks)
    dice_bc = (2.0 * inter + eps) / (psum + tsum + eps)   # (B, C)
    dice_c = jnp.mean(dice_bc, axis=0)                    # reduction='mean'
    mean_dice = jnp.mean(dice_c[1:])                      # channels 1..C-1
    return 1.0 - mean_dice


@functools.partial(
    jax.jit, static_argnames=("eps", "max_spatial_tile", "num_chunks"))
def dice_loss(logits, onehot_target, eps=1e-9,
              max_spatial_tile=32768, num_chunks=2):
    """Pallas implementation of DiceLoss.forward (normalize_fct='softmax',
    reduction='mean', global_dice=False), matching the PyTorch module's
    (logits, onehot_target) interface.

    NOTE: assumes onehot_target is a strict one-hot encoding (as its name
    implies); it is collapsed to integer labels so the kernel streams labels
    instead of a C-times-larger float one-hot."""
    labels = jnp.argmax(onehot_target, axis=1).astype(jnp.int32)
    return dice_loss_from_labels(
        logits, labels, eps=eps,
        max_spatial_tile=max_spatial_tile, num_chunks=num_chunks)


def dice_loss_ref(logits, onehot_target, eps=1e-9):
    """Pure-JAX reference mirroring the PyTorch semantics."""
    pred = jax.nn.softmax(logits.astype(jnp.float32), axis=1)
    tg = onehot_target.astype(jnp.float32)
    red_axes = tuple(range(2, logits.ndim))
    intersect = jnp.sum(pred * tg, axis=red_axes)               # (B, C)
    union = jnp.sum(pred, axis=red_axes) + jnp.sum(tg, axis=red_axes)
    dice_bc = (2.0 * intersect + eps) / (union + eps)
    dice_c = jnp.mean(dice_bc, axis=0)
    return 1.0 - jnp.mean(dice_c[1:])


if __name__ == "__main__":
    key = jax.random.PRNGKey(0)
    k1, k2, k3, k4 = jax.random.split(key, 4)

    B, C = 2, 4

    # --- Test 1: power-of-two volume, f32 logits, one-hot entry point -------
    X = Y = Z = 16                                   # S = 4096
    logits = jax.random.normal(k1, (B, C, X, Y, Z), dtype=jnp.float32)
    labels = jax.random.randint(k2, (B, X, Y, Z), 0, C)
    onehot = jnp.transpose(
        jax.nn.one_hot(labels, C, dtype=jnp.float32), (0, 4, 1, 2, 3))

    loss = jax.block_until_ready(dice_loss(logits, onehot))
    ref = dice_loss_ref(logits, onehot)
    assert jnp.allclose(loss, ref, atol=1e-5, rtol=1e-5), (loss, ref)

    # --- Test 2: bf16 logits via the label fast path (no one-hot in HBM) ----
    loss_bf16 = jax.block_until_ready(
        dice_loss_from_labels(logits.astype(jnp.bfloat16), labels))
    ref_bf16 = dice_loss_ref(logits.astype(jnp.bfloat16), onehot)
    assert jnp.allclose(loss_bf16, ref_bf16, atol=1e-4, rtol=1e-4), (
        loss_bf16, ref_bf16)

    # --- Test 3: ragged spatial extent + forced small tile: exercises the
    #             zero-pad/mask path, multi-step accumulation and the 2-chunk
    #             parallel grid axis (both TensorCores on v7x) ---------------
    X2, Y2, Z2 = 7, 9, 11                            # S = 693, not 128-aligned
    logits2 = jax.random.normal(k3, (B, C, X2, Y2, Z2), dtype=jnp.float32)
    labels2 = jax.random.randint(k4, (B, X2, Y2, Z2), 0, C)
    onehot2 = jnp.transpose(
        jax.nn.one_hot(labels2, C, dtype=jnp.float32), (0, 4, 1, 2, 3))

    loss2 = jax.block_until_ready(
        dice_loss(logits2, onehot2, max_spatial_tile=256))
    ref2 = dice_loss_ref(logits2, onehot2)
    assert jnp.allclose(loss2, ref2, atol=1e-5, rtol=1e-5), (loss2, ref2)

    print("KERNEL_OK")
</pallas_src>

<mosaic_0001>
module attributes {stable_mosaic.version = 11 : i64} {
  func.func @_dice_sums_kernel(%arg0: i32, %arg1: i32, %arg2: memref<2x4x4096xf32, #tpu.memory_space<vmem>>, %arg3: memref<2x1x4096xi32, #tpu.memory_space<vmem>>, %arg4: memref<1x2x4xf32, #tpu.memory_space<vmem>>, %arg5: memref<1x2x4xf32, #tpu.memory_space<vmem>>, %arg6: memref<1x2x4xf32, #tpu.memory_space<vmem>>) attributes {dimension_semantics = [#tpu.dimension_semantics<parallel>, #tpu.dimension_semantics<arbitrary>], iteration_bounds = array<i64: 1, 1>, scalar_prefetch = 0 : i64, scratch_operands = 0 : i64, tpu.core_type = #tpu.core_type<tc>, window_params = [{transform_indices = @transform_0, window_bounds = array<i64: 2, 4, 4096>}, {transform_indices = @transform_1, window_bounds = array<i64: 2, 1, 4096>}, {transform_indices = @transform_2, window_bounds = array<i64: 1, 2, 4>}, {transform_indices = @transform_3, window_bounds = array<i64: 1, 2, 4>}, {transform_indices = @transform_4, window_bounds = array<i64: 1, 2, 4>}]} {
    %c0_i32 = arith.constant 0 : i32
    %0 = arith.cmpi eq, %arg1, %c0_i32 : i32
    %1 = arith.extui %0 : i1 to i32
    %c0_i32_0 = arith.constant 0 : i32
    %2 = arith.cmpi ne, %1, %c0_i32_0 : i32
    scf.if %2 {
      %cst_29 = arith.constant 0.000000e+00 : f32
      %42 = vector.broadcast %cst_29 : f32 to vector<1x2x4xf32>
      %c0_30 = arith.constant 0 : index
      %c0_31 = arith.constant 0 : index
      %c0_32 = arith.constant 0 : index
      %43 = vector.load %arg4[%c0_30, %c0_31, %c0_32] : memref<1x2x4xf32, #tpu.memory_space<vmem>>, vector<1x2x4xf32>
      tpu.vector_store %arg4[%c0_30, %c0_31, %c0_32], %42 {strides = array<i32>} : memref<1x2x4xf32, #tpu.memory_space<vmem>>, vector<1x2x4xf32>,
      %cst_33 = arith.constant 0.000000e+00 : f32
      %44 = vector.broadcast %cst_33 : f32 to vector<1x2x4xf32>
      %c0_34 = arith.constant 0 : index
      %c0_35 = arith.constant 0 : index
      %c0_36 = arith.constant 0 : index
      %45 = vector.load %arg5[%c0_34, %c0_35, %c0_36] : memref<1x2x4xf32, #tpu.memory_space<vmem>>, vector<1x2x4xf32>
      tpu.vector_store %arg5[%c0_34, %c0_35, %c0_36], %44 {strides = array<i32>} : memref<1x2x4xf32, #tpu.memory_space<vmem>>, vector<1x2x4xf32>,
      %cst_37 = arith.constant 0.000000e+00 : f32
      %46 = vector.broadcast %cst_37 : f32 to vector<1x2x4xf32>
      %c0_38 = arith.constant 0 : index
      %c0_39 = arith.constant 0 : index
      %c0_40 = arith.constant 0 : index
      %47 = vector.load %arg6[%c0_38, %c0_39, %c0_40] : memref<1x2x4xf32, #tpu.memory_space<vmem>>, vector<1x2x4xf32>
      tpu.vector_store %arg6[%c0_38, %c0_39, %c0_40], %46 {strides = array<i32>} : memref<1x2x4xf32, #tpu.memory_space<vmem>>, vector<1x2x4xf32>,
    } else {
    }
    %c0 = arith.constant 0 : index
    %c0_1 = arith.constant 0 : index
    %c0_2 = arith.constant 0 : index
    %3 = vector.load %arg2[%c0, %c0_1, %c0_2] : memref<2x4x4096xf32, #tpu.memory_space<vmem>>, vector<2x4x4096xf32>
    %c0_3 = arith.constant 0 : index
    %c0_4 = arith.constant 0 : index
    %c0_5 = arith.constant 0 : index
    %4 = vector.load %arg3[%c0_3, %c0_4, %c0_5] : memref<2x1x4096xi32, #tpu.memory_space<vmem>>, vector<2x1x4096xi32>
    %cst = arith.constant dense<0xFF800000> : vector<2x4096xf32>
    %5 = vector.multi_reduction <maximumf>, %3, %cst [1] : vector<2x4x4096xf32> to vector<2x4096xf32>
    %6 = vector.shape_cast %5 : vector<2x4096xf32> to vector<2x1x4096xf32>
    %7 = vector.broadcast %6 : vector<2x1x4096xf32> to vector<2x4x4096xf32>
    %8 = arith.subf %3, %7 : vector<2x4x4096xf32>
    %9 = math.exp %8 : vector<2x4x4096xf32>
    %cst_6 = arith.constant dense<0.000000e+00> : vector<2x4096xf32>
    %10 = vector.multi_reduction <add>, %9, %cst_6 [1] : vector<2x4x4096xf32> to vector<2x4096xf32>
    %11 = vector.shape_cast %10 : vector<2x4096xf32> to vector<2x1x4096xf32>
    %12 = tpu.reciprocal %11 : vector<2x1x4096xf32> -> vector<2x1x4096xf32>
    %13 = vector.broadcast %12 : vector<2x1x4096xf32> to vector<2x4x4096xf32>
    %14 = arith.mulf %9, %13 : vector<2x4x4096xf32>
    %15 = tpu.iota {dimensions = array<i32: 1>} : vector<2x4x4096xi32>
    %16 = vector.broadcast %4 : vector<2x1x4096xi32> to vector<2x4x4096xi32>
    %17 = arith.cmpi eq, %16, %15 : vector<2x4x4096xi32>
    %18 = arith.extui %17 : vector<2x4x4096xi1> to vector<2x4x4096xi32>
    %19 = arith.sitofp %18 : vector<2x4x4096xi32> to vector<2x4x4096xf32>
    %c0_i32_7 = arith.constant 0 : i32
    %20 = vector.broadcast %c0_i32_7 : i32 to vector<2x1x4096xi32>
    %21 = arith.cmpi sge, %4, %20 : vector<2x1x4096xi32>
    %22 = arith.extui %21 : vector<2x1x4096xi1> to vector<2x1x4096xi32>
    %23 = arith.sitofp %22 : vector<2x1x4096xi32> to vector<2x1x4096xf32>
    %c0_8 = arith.constant 0 : index
    %c0_9 = arith.constant 0 : index
    %c0_10 = arith.constant 0 : index
    %24 = vector.load %arg4[%c0_8, %c0_9, %c0_10] : memref<1x2x4xf32, #tpu.memory_space<vmem>>, vector<1x2x4xf32>
    %25 = arith.mulf %14, %19 : vector<2x4x4096xf32>
    %cst_11 = arith.constant dense<0.000000e+00> : vector<2x4xf32>
    %26 = vector.multi_reduction <add>, %25, %cst_11 [2] : vector<2x4x4096xf32> to vector<2x4xf32>
    %27 = vector.shape_cast %26 : vector<2x4xf32> to vector<1x2x4xf32>
    %28 = arith.addf %24, %27 : vector<1x2x4xf32>
    %c0_12 = arith.constant 0 : index
    %c0_13 = arith.constant 0 : index
    %c0_14 = arith.constant 0 : index
    %29 = vector.load %arg4[%c0_12, %c0_13, %c0_14] : memref<1x2x4xf32, #tpu.memory_space<vmem>>, vector<1x2x4xf32>
    tpu.vector_store %arg4[%c0_12, %c0_13, %c0_14], %28 {strides = array<i32>} : memref<1x2x4xf32, #tpu.memory_space<vmem>>, vector<1x2x4xf32>,
    %c0_15 = arith.constant 0 : index
    %c0_16 = arith.constant 0 : index
    %c0_17 = arith.constant 0 : index
    %30 = vector.load %arg5[%c0_15, %c0_16, %c0_17] : memref<1x2x4xf32, #tpu.memory_space<vmem>>, vector<1x2x4xf32>
    %31 = vector.broadcast %23 : vector<2x1x4096xf32> to vector<2x4x4096xf32>
    %32 = arith.mulf %14, %31 : vector<2x4x4096xf32>
    %cst_18 = arith.constant dense<0.000000e+00> : vector<2x4xf32>
    %33 = vector.multi_reduction <add>, %32, %cst_18 [2] : vector<2x4x4096xf32> to vector<2x4xf32>
    %34 = vector.shape_cast %33 : vector<2x4xf32> to vector<1x2x4xf32>
    %35 = arith.addf %30, %34 : vector<1x2x4xf32>
    %c0_19 = arith.constant 0 : index
    %c0_20 = arith.constant 0 : index
    %c0_21 = arith.constant 0 : index
    %36 = vector.load %arg5[%c0_19, %c0_20, %c0_21] : memref<1x2x4xf32, #tpu.memory_space<vmem>>, vector<1x2x4xf32>
    tpu.vector_store %arg5[%c0_19, %c0_20, %c0_21], %35 {strides = array<i32>} : memref<1x2x4xf32, #tpu.memory_space<vmem>>, vector<1x2x4xf32>,
    %c0_22 = arith.constant 0 : index
    %c0_23 = arith.constant 0 : index
    %c0_24 = arith.constant 0 : index
    %37 = vector.load %arg6[%c0_22, %c0_23, %c0_24] : memref<1x2x4xf32, #tpu.memory_space<vmem>>, vector<1x2x4xf32>
    %cst_25 = arith.constant dense<0.000000e+00> : vector<2x4xf32>
    %38 = vector.multi_reduction <add>, %19, %cst_25 [2] : vector<2x4x4096xf32> to vector<2x4xf32>
    %39 = vector.shape_cast %38 : vector<2x4xf32> to vector<1x2x4xf32>
    %40 = arith.addf %37, %39 : vector<1x2x4xf32>
    %c0_26 = arith.constant 0 : index
    %c0_27 = arith.constant 0 : index
    %c0_28 = arith.constant 0 : index
    %41 = vector.load %arg6[%c0_26, %c0_27, %c0_28] : memref<1x2x4xf32, #tpu.memory_space<vmem>>, vector<1x2x4xf32>
    tpu.vector_store %arg6[%c0_26, %c0_27, %c0_28], %40 {strides = array<i32>} : memref<1x2x4xf32, #tpu.memory_space<vmem>>, vector<1x2x4xf32>,
    return
  }
  func.func @transform_0(%arg0: i32, %arg1: i32) -> (i32, i32, i32) {
    %c1_i32 = arith.constant 1 : i32
    %0 = arith.muli %arg0, %c1_i32 : i32
    %1 = arith.addi %0, %arg1 : i32
    %c0_i32 = arith.constant 0 : i32
    %c0_i32_0 = arith.constant 0 : i32
    %c0_i32_1 = arith.constant 0 : i32
    return %c0_i32, %c0_i32_0, %1 : i32, i32, i32
  }
  func.func @transform_1(%arg0: i32, %arg1: i32) -> (i32, i32, i32) {
    %c1_i32 = arith.constant 1 : i32
    %0 = arith.muli %arg0, %c1_i32 : i32
    %1 = arith.addi %0, %arg1 : i32
    %c0_i32 = arith.constant 0 : i32
    %c0_i32_0 = arith.constant 0 : i32
    %c0_i32_1 = arith.constant 0 : i32
    return %c0_i32, %c0_i32_0, %1 : i32, i32, i32
  }
  func.func @transform_2(%arg0: i32, %arg1: i32) -> (i32, i32, i32) {
    %c0_i32 = arith.constant 0 : i32
    %c0_i32_0 = arith.constant 0 : i32
    %c0_i32_1 = arith.constant 0 : i32
    return %arg0, %c0_i32, %c0_i32_0 : i32, i32, i32
  }
  func.func @transform_3(%arg0: i32, %arg1: i32) -> (i32, i32, i32) {
    %c0_i32 = arith.constant 0 : i32
    %c0_i32_0 = arith.constant 0 : i32
    %c0_i32_1 = arith.constant 0 : i32
    return %arg0, %c0_i32, %c0_i32_0 : i32, i32, i32
  }
  func.func @transform_4(%arg0: i32, %arg1: i32) -> (i32, i32, i32) {
    %c0_i32 = arith.constant 0 : i32
    %c0_i32_0 = arith.constant 0 : i32
    %c0_i32_1 = arith.constant 0 : i32
    return %arg0, %c0_i32, %c0_i32_0 : i32, i32, i32
  }
}

</mosaic_0001>

<llo_original>
// kernel: dice_loss_from_labels.1
$region0: #{dice_loss_from_labels.1}
  #allocation0 [shape = 'u32[]', space=smem, size = 0x4, offset = 0x4, fixed_abs, tag = 'smem constant byte address 0x4 - core index']
  #allocation1 [shape = 'u32[144,128]{1,0:T(1,128)}', space=vmem, size = 0x12000, scoped, tag = 'internal scratch']
  %s0 = inlined_call_operand.vmem [shape: f32[2,4,4096], index: 0, kind: input, shape index: {}]
  %s1 = inlined_call_operand.vmem [shape: s32[2,1,4096], index: 1, kind: input, shape index: {}]
  %s2 = inlined_call_operand.vmem [shape: f32[1,2,4], index: 2, kind: output, shape index: {0}]
  %s3 = inlined_call_operand.vmem [shape: f32[1,2,4], index: 3, kind: output, shape index: {1}]
  %s4 = inlined_call_operand.vmem [shape: f32[1,2,4], index: 4, kind: output, shape index: {2}]
  %5 = xla_tuple %s2, %s3, %s4
  %s6 = sld [smem:[#allocation0]]
  $region38: #{dice_loss_from_labels.1} parent=0
    _
  %s8 = ssub.s32 1, %s6
  %s9 = scalar_select 0, %s8, %s6
  // Predicated region
  $region2: #{dice_loss_from_labels.1} parent=0 // pred_check
    _
  $region3: #{dice_loss_from_labels.1} parent=0 // pred_check_branch
    %11 = sbr.rel (0) target = $region5
  $region4: #{dice_loss_from_labels.1} parent=0 // pred_region
    %s12 = sadd.s32 0, 0
    %s13 = smul.u32 32, %s12
    %p14 = scmp.lt.s32.totalorder %s13, 31
    %s15 = scalar_select %p14, %s13, 31
    %s16 = smul.addr %s15, 4
    %s17 = scalar_lea.vmem %s0, %s16
    %s18 = sadd.s32 0, 0
    %s19 = smul.u32 32, %s18
  $region5: #{dice_loss_from_labels.1} parent=0 // pred_fallthru
    _
  // Predicated region
  $region6: #{dice_loss_from_labels.1} parent=0 // pred_check
    _
  $region7: #{dice_loss_from_labels.1} parent=0 // pred_check_branch
    %21 = sbr.rel (0) target = $region9
  $region8: #{dice_loss_from_labels.1} parent=0 // pred_region
    %s22 = sadd.s32 0, 0
    %s23 = smul.u32 32, %s22
    %p24 = scmp.lt.s32.totalorder %s23, 31
    %s25 = scalar_select %p24, %s23, 31
    %s26 = scalar_lea.vmem %s1, %s25
    %s27 = sadd.s32 0, 0
    %s28 = smul.u32 32, %s27
  $region9: #{dice_loss_from_labels.1} parent=0 // pred_fallthru
    _
  %s29 = sadd.s32 0, 0
  %s30 = smul.u32 32, %s29
  %p31 = scmp.lt.s32.totalorder %s30, 31
  %s32 = scalar_select %p31, %s30, 31
  %s33 = smul.addr %s32, 4
  %s34 = scalar_lea.vmem %s0, %s33
  %s35 = sadd.s32 0, 0
  %s36 = smul.u32 32, %s35
  %p37 = scmp.lt.s32.totalorder %s36, 31
  %s38 = scalar_select %p37, %s36, 31
  %s39 = scalar_lea.vmem %s1, %s38
  %s40 = sadd.s32 0, 0
  %s41 = smul.u32 32, %s40
  %p42 = scmp.lt.s32.totalorder %s41, 31
  %s43 = scalar_select %p42, %s41, 31
  %s44 = smul.addr %s43, 4
  %s45 = scalar_lea.vmem %s0, %s44
  %s46 = sadd.s32 0, 0
  %s47 = smul.u32 32, %s46
  %s48 = sadd.s32 0, 0
  %s49 = smul.u32 32, %s48
  %p50 = scmp.lt.s32.totalorder %s49, 31
  %s51 = scalar_select %p50, %s49, 31
  %s52 = scalar_lea.vmem %s1, %s51
  %s53 = sadd.s32 0, 0
  %s54 = smul.u32 32, %s53
  %p55 = scmp.eq.s32.totalorder 0, 0
  // Predicated region
  $region10: #{dice_loss_from_labels.1} parent=0 // pred_check
    %p56 = pneg %p55
  $region11: #{dice_loss_from_labels.1} parent=0 // pred_check_branch
    %58 = sbr.rel (%p56) target = $region13
  $region12: #{dice_loss_from_labels.1} parent=0 // pred_region
    %vm59 = vcmask 25600
    %60 = vst.msk [vmem:[%s2] sm:$0x3] %vm59, 0.0
    %61 = vst.msk [vmem:[%s3] sm:$0x3] %vm59, 0.0
    %62 = vst.msk [vmem:[%s4] sm:$0x3] %vm59, 0.0
  $region13: #{dice_loss_from_labels.1} parent=0 // pred_fallthru
    _
  %v63 = vld [vmem:[%s45] sm:$0xff]
  %v64 = vld [vmem:[%s45 + $0x8] sm:$0xff]
  %v65 = vld [vmem:[%s45 + $0x10] sm:$0xff]
  %v66 = vld [vmem:[%s45 + $0x18] sm:$0xff]
  %v67 = vld [vmem:[%s45 + $0x20] sm:$0xff]
  %v68 = vld [vmem:[%s45 + $0x28] sm:$0xff]
  %v69 = vld [vmem:[%s45 + $0x30] sm:$0xff]
  %v70 = vld [vmem:[%s45 + $0x38] sm:$0xff]
  %v71 = vld [vmem:[%s45 + $0x40] sm:$0xff]
  %v72 = vld [vmem:[%s45 + $0x48] sm:$0xff]
  %v73 = vld [vmem:[%s45 + $0x50] sm:$0xff]
  %v74 = vld [vmem:[%s45 + $0x58] sm:$0xff]
  %v75 = vld [vmem:[%s45 + $0x60] sm:$0xff]
  %v76 = vld [vmem:[%s45 + $0x68] sm:$0xff]
  %v77 = vld [vmem:[%s45 + $0x70] sm:$0xff]
  %v78 = vld [vmem:[%s45 + $0x78] sm:$0xff]
  %v79 = vld [vmem:[%s45 + $0x80] sm:$0xff]
  %v80 = vld [vmem:[%s45 + $0x88] sm:$0xff]
  %v81 = vld [vmem:[%s45 + $0x90] sm:$0xff]
  %v82 = vld [vmem:[%s45 + $0x98] sm:$0xff]
  %v83 = vld [vmem:[%s45 + $0xa0] sm:$0xff]
  %v84 = vld [vmem:[%s45 + $0xa8] sm:$0xff]
  %v85 = vld [vmem:[%s45 + $0xb0] sm:$0xff]
  %v86 = vld [vmem:[%s45 + $0xb8] sm:$0xff]
  %v87 = vld [vmem:[%s45 + $0xc0] sm:$0xff]
  %v88 = vld [vmem:[%s45 + $0xc8] sm:$0xff]
  %v89 = vld [vmem:[%s45 + $0xd0] sm:$0xff]
  %v90 = vld [vmem:[%s45 + $0xd8] sm:$0xff]
  %v91 = vld [vmem:[%s45 + $0xe0] sm:$0xff]
  %v92 = vld [vmem:[%s45 + $0xe8] sm:$0xff]
  %v93 = vld [vmem:[%s45 + $0xf0] sm:$0xff]
  %v94 = vld [vmem:[%s45 + $0xf8] sm:$0xff]
  %v95 = vld [vmem:[%s52] sm:$0xff]
  %v96 = vld [vmem:[%s52 + $0x8] sm:$0xff]
  %v97 = vld [vmem:[%s52 + $0x10] sm:$0xff]
  %v98 = vld [vmem:[%s52 + $0x18] sm:$0xff]
  %v99 = vld [vmem:[%s52 + $0x20] sm:$0xff]
  %v100 = vld [vmem:[%s52 + $0x28] sm:$0xff]
  %v101 = vld [vmem:[%s52 + $0x30] sm:$0xff]
  %v102 = vld [vmem:[%s52 + $0x38] sm:$0xff]
  %v135 = vcombine.high %v63, %v63
  %v136 = vcombine.high %v64, %v64
  %v137 = vcombine.high %v65, %v65
  %v138 = vcombine.high %v66, %v66
  %v139 = vcombine.high %v67, %v67
  %v140 = vcombine.high %v68, %v68
  %v141 = vcombine.high %v69, %v69
  %v142 = vcombine.high %v70, %v70
  %v143 = vcombine.high %v71, %v71
  %v144 = vcombine.high %v72, %v72
  %v145 = vcombine.high %v73, %v73
  %v146 = vcombine.high %v74, %v74
  %v147 = vcombine.high %v75, %v75
  %v148 = vcombine.high %v76, %v76
  %v149 = vcombine.high %v77, %v77
  %v150 = vcombine.high %v78, %v78
  %v151 = vcombine.high %v79, %v79
  %v152 = vcombine.high %v80, %v80
  %v153 = vcombine.high %v81, %v81
  %v154 = vcombine.high %v82, %v82
  %v155 = vcombine.high %v83, %v83
  %v156 = vcombine.high %v84, %v84
  %v157 = vcombine.high %v85, %v85
  %v158 = vcombine.high %v86, %v86
  %v159 = vcombine.high %v87, %v87
  %v160 = vcombine.high %v88, %v88
  %v161 = vcombine.high %v89, %v89
  %v162 = vcombine.high %v90, %v90
  %v163 = vcombine.high %v91, %v91
  %v164 = vcombine.high %v92, %v92
  %v165 = vcombine.high %v93, %v93
  %v166 = vcombine.high %v94, %v94
  %vm199 = vcmask 1043456
  %v200 = vsel %vm199, %v63, -inf
  %v201 = vrot.slane %v200, 4
  %v202 = vmax.f32 %v200, %v201
  %v203 = vrot.slane %v202, 2
  %v204 = vmax.f32 %v202, %v203
  %v205 = vrot.slane %v204, 1
  %v206 = vmax.f32 %v204, %v205
  %v207 = vsel %vm199, %v135, -inf
  %v208 = vrot.slane %v207, 4
  %v209 = vmax.f32 %v207, %v208
  %v210 = vrot.slane %v209, 2
  %v211 = vmax.f32 %v209, %v210
  %v212 = vrot.slane %v211, 1
  %v213 = vmax.f32 %v211, %v212
  %v214 = vsel %vm199, %v64, -inf
  %v215 = vrot.slane %v214, 4
  %v216 = vmax.f32 %v214, %v215
  %v217 = vrot.slane %v216, 2
  %v218 = vmax.f32 %v216, %v217
  %v219 = vrot.slane %v218, 1
  %v220 = vmax.f32 %v218, %v219
  %v221 = vsel %vm199, %v136, -inf
  %v222 = vrot.slane %v221, 4
  %v223 = vmax.f32 %v221, %v222
  %v224 = vrot.slane %v223, 2
  %v225 = vmax.f32 %v223, %v224
  %v226 = vrot.slane %v225, 1
  %v227 = vmax.f32 %v225, %v226
  %v228 = vsel %vm199, %v65, -inf
  %v229 = vrot.slane %v228, 4
  %v230 = vmax.f32 %v228, %v229
  %v231 = vrot.slane %v230, 2
  %v232 = vmax.f32 %v230, %v231
  %v233 = vrot.slane %v232, 1
  %v234 = vmax.f32 %v232, %v233
  %v235 = vsel %vm199, %v137, -inf
  %v236 = vrot.slane %v235, 4
  %v237 = vmax.f32 %v235, %v236
  %v238 = vrot.slane %v237, 2
  %v239 = vmax.f32 %v237, %v238
  %v240 = vrot.slane %v239, 1
  %v241 = vmax.f32 %v239, %v240
  %v242 = vsel %vm199, %v66, -inf
  %v243 = vrot.slane %v242, 4
  %v244 = vmax.f32 %v242, %v243
  %v245 = vrot.slane %v244, 2
  %v246 = vmax.f32 %v244, %v245
  %v247 = vrot.slane %v246, 1
  %v248 = vmax.f32 %v246, %v247
  %v249 = vsel %vm199, %v138, -inf
  %v250 = vrot.slane %v249, 4
  %v251 = vmax.f32 %v249, %v250
  %v252 = vrot.slane %v251, 2
  %v253 = vmax.f32 %v251, %v252
  %v254 = vrot.slane %v253, 1
  %v255 = vmax.f32 %v253, %v254
  %v256 = vsel %vm199, %v67, -inf
  %v257 = vrot.slane %v256, 4
  %v258 = vmax.f32 %v256, %v257
  %v259 = vrot.slane %v258, 2
  %v260 = vmax.f32 %v258, %v259
  %v261 = vrot.slane %v260, 1
  %v262 = vmax.f32 %v260, %v261
  %v263 = vsel %vm199, %v139, -inf
  %v264 = vrot.slane %v263, 4
  %v265 = vmax.f32 %v263, %v264
  %v266 = vrot.slane %v265, 2
  %v267 = vmax.f32 %v265, %v266
  %v268 = vrot.slane %v267, 1
  %v269 = vmax.f32 %v267, %v268
  %v270 = vsel %vm199, %v68, -inf
  %v271 = vrot.slane %v270, 4
  %v272 = vmax.f32 %v270, %v271
  %v273 = vrot.slane %v272, 2
  %v274 = vmax.f32 %v272, %v273
  %v275 = vrot.slane %v274, 1
  %v276 = vmax.f32 %v274, %v275
  %v277 = vsel %vm199, %v140, -inf
  %v278 = vrot.slane %v277, 4
  %v279 = vmax.f32 %v277, %v278
  %v280 = vrot.slane %v279, 2
  %v281 = vmax.f32 %v279, %v280
  %v282 = vrot.slane %v281, 1
  %v283 = vmax.f32 %v281, %v282
  %v284 = vsel %vm199, %v69, -inf
  %v285 = vrot.slane %v284, 4
  %v286 = vmax.f32 %v284, %v285
  %v287 = vrot.slane %v286, 2
  %v288 = vmax.f32 %v286, %v287
  %v289 = vrot.slane %v288, 1
  %v290 = vmax.f32 %v288, %v289
  %v291 = vsel %vm199, %v141, -inf
  %v292 = vrot.slane %v291, 4
  %v293 = vmax.f32 %v291, %v292
  %v294 = vrot.slane %v293, 2
  %v295 = vmax.f32 %v293, %v294
  %v296 = vrot.slane %v295, 1
  %v297 = vmax.f32 %v295, %v296
  %v298 = vsel %vm199, %v70, -inf
  %v299 = vrot.slane %v298, 4
  %v300 = vmax.f32 %v298, %v299
  %v301 = vrot.slane %v300, 2
  %v302 = vmax.f32 %v300, %v301
  %v303 = vrot.slane %v302, 1
  %v304 = vmax.f32 %v302, %v303
  %v305 = vsel %vm199, %v142, -inf
  %v306 = vrot.slane %v305, 4
  %v307 = vmax.f32 %v305, %v306
  %v308 = vrot.slane %v307, 2
  %v309 = vmax.f32 %v307, %v308
  %v310 = vrot.slane %v309, 1
  %v311 = vmax.f32 %v309, %v310
  %v312 = vsel %vm199, %v71, -inf
  %v313 = vrot.slane %v312, 4
  %v314 = vmax.f32 %v312, %v313
  %v315 = vrot.slane %v314, 2
  %v316 = vmax.f32 %v314, %v315
  %v317 = vrot.slane %v316, 1
  %v318 = vmax.f32 %v316, %v317
  %v319 = vsel %vm199, %v143, -inf
  %v320 = vrot.slane %v319, 4
  %v321 = vmax.f32 %v319, %v320
  %v322 = vrot.slane %v321, 2
  %v323 = vmax.f32 %v321, %v322
  %v324 = vrot.slane %v323, 1
  %v325 = vmax.f32 %v323, %v324
  %v326 = vsel %vm199, %v72, -inf
  %v327 = vrot.slane %v326, 4
  %v328 = vmax.f32 %v326, %v327
  %v329 = vrot.slane %v328, 2
  %v330 = vmax.f32 %v328, %v329
  %v331 = vrot.slane %v330, 1
  %v332 = vmax.f32 %v330, %v331
  %v333 = vsel %vm199, %v144, -inf
  %v334 = vrot.slane %v333, 4
  %v335 = vmax.f32 %v333, %v334
  %v336 = vrot.slane %v335, 2
  %v337 = vmax.f32 %v335, %v336
  %v338 = vrot.slane %v337, 1
  %v339 = vmax.f32 %v337, %v338
  %v340 = vsel %vm199, %v73, -inf
  %v341 = vrot.slane %v340, 4
  %v342 = vmax.f32 %v340, %v341
  %v343 = vrot.slane %v342, 2
  %v344 = vmax.f32 %v342, %v343
  %v345 = vrot.slane %v344, 1
  %v346 = vmax.f32 %v344, %v345
  %v347 = vsel %vm199, %v145, -inf
  %v348 = vrot.slane %v347, 4
  %v349 = vmax.f32 %v347, %v348
  %v350 = vrot.slane %v349, 2
  %v351 = vmax.f32 %v349, %v350
  %v352 = vrot.slane %v351, 1
  %v353 = vmax.f32 %v351, %v352
  %v354 = vsel %vm199, %v74, -inf
  %v355 = vrot.slane %v354, 4
  %v356 = vmax.f32 %v354, %v355
  %v357 = vrot.slane %v356, 2
  %v358 = vmax.f32 %v356, %v357
  %v359 = vrot.slane %v358, 1
  %v360 = vmax.f32 %v358, %v359
  %v361 = vsel %vm199, %v146, -inf
  %v362 = vrot.slane %v361, 4
  %v363 = vmax.f32 %v361, %v362
  %v364 = vrot.slane %v363, 2
  %v365 = vmax.f32 %v363, %v364
  %v366 = vrot.slane %v365, 1
  %v367 = vmax.f32 %v365, %v366
  %v368 = vsel %vm199, %v75, -inf
  %v369 = vrot.slane %v368, 4
  %v370 = vmax.f32 %v368, %v369
  %v371 = vrot.slane %v370, 2
  %v372 = vmax.f32 %v370, %v371
  %v373 = vrot.slane %v372, 1
  %v374 = vmax.f32 %v372, %v373
  %v375 = vsel %vm199, %v147, -inf
  %v376 = vrot.slane %v375, 4
  %v377 = vmax.f32 %v375, %v376
  %v378 = vrot.slane %v377, 2
  %v379 = vmax.f32 %v377, %v378
  %v380 = vrot.slane %v379, 1
  %v381 = vmax.f32 %v379, %v380
  %v382 = vsel %vm199, %v76, -inf
  %v383 = vrot.slane %v382, 4
  %v384 = vmax.f32 %v382, %v383
  %v385 = vrot.slane %v384, 2
  %v386 = vmax.f32 %v384, %v385
  %v387 = vrot.slane %v386, 1
  %v388 = vmax.f32 %v386, %v387
  %v389 = vsel %vm199, %v148, -inf
  %v390 = vrot.slane %v389, 4
  %v391 = vmax.f32 %v389, %v390
  %v392 = vrot.slane %v391, 2
  %v393 = vmax.f32 %v391, %v392
  %v394 = vrot.slane %v393, 1
  %v395 = vmax.f32 %v393, %v394
  %v396 = vsel %vm199, %v77, -inf
  %v397 = vrot.slane %v396, 4
  %v398 = vmax.f32 %v396, %v397
  %v399 = vrot.slane %v398, 2
  %v400 = vmax.f32 %v398, %v399
  %v401 = vrot.slane %v400, 1
  %v402 = vmax.f32 %v400, %v401
  %v403 = vsel %vm199, %v149, -inf
  %v404 = vrot.slane %v403, 4
  %v405 = vmax.f32 %v403, %v404
  %v406 = vrot.slane %v405, 2
  %v407 = vmax.f32 %v405, %v406
  %v408 = vrot.slane %v407, 1
  %v409 = vmax.f32 %v407, %v408
  %v410 = vsel %vm199, %v78, -inf
  %v411 = vrot.slane %v410, 4
  %v412 = vmax.f32 %v410, %v411
  %v413 = vrot.slane %v412, 2
  %v414 = vmax.f32 %v412, %v413
  %v415 = vrot.slane %v414, 1
  %v416 = vmax.f32 %v414, %v415
  %v417 = vsel %vm199, %v150, -inf
  %v418 = vrot.slane %v417, 4
  %v419 = vmax.f32 %v417, %v418
  %v420 = vrot.slane %v419, 2
  %v421 = vmax.f32 %v419, %v420
  %v422 = vrot.slane %v421, 1
  %v423 = vmax.f32 %v421, %v422
  %v424 = vsel %vm199, %v79, -inf
  %v425 = vrot.slane %v424, 4
  %v426 = vmax.f32 %v424, %v425
  %v427 = vrot.slane %v426, 2
  %v428 = vmax.f32 %v426, %v427
  %v429 = vrot.slane %v428, 1
  %v430 = vmax.f32 %v428, %v429
  %v431 = vsel %vm199, %v151, -inf
  %v432 = vrot.slane %v431, 4
  %v433 = vmax.f32 %v431, %v432
  %v434 = vrot.slane %v433, 2
  %v435 = vmax.f32 %v433, %v434
  %v436 = vrot.slane %v435, 1
  %v437 = vmax.f32 %v435, %v436
  %v438 = vsel %vm199, %v80, -inf
  %v439 = vrot.slane %v438, 4
  %v440 = vmax.f32 %v438, %v439
  %v441 = vrot.slane %v440, 2
  %v442 = vmax.f32 %v440, %v441
  %v443 = vrot.slane %v442, 1
  %v444 = vmax.f32 %v442, %v443
  %v445 = vsel %vm199, %v152, -inf
  %v446 = vrot.slane %v445, 4
  %v447 = vmax.f32 %v445, %v446
  %v448 = vrot.slane %v447, 2
  %v449 = vmax.f32 %v447, %v448
  %v450 = vrot.slane %v449, 1
  %v451 = vmax.f32 %v449, %v450
  %v452 = vsel %vm199, %v81, -inf
  %v453 = vrot.slane %v452, 4
  %v454 = vmax.f32 %v452, %v453
  %v455 = vrot.slane %v454, 2
  %v456 = vmax.f32 %v454, %v455
  %v457 = vrot.slane %v456, 1
  %v458 = vmax.f32 %v456, %v457
  %v459 = vsel %vm199, %v153, -inf
  %v460 = vrot.slane %v459, 4
  %v461 = vmax.f32 %v459, %v460
  %v462 = vrot.slane %v461, 2
  %v463 = vmax.f32 %v461, %v462
  %v464 = vrot.slane %v463, 1
  %v465 = vmax.f32 %v463, %v464
  %v466 = vsel %vm199, %v82, -inf
  %v467 = vrot.slane %v466, 4
  %v468 = vmax.f32 %v466, %v467
  %v469 = vrot.slane %v468, 2
  %v470 = vmax.f32 %v468, %v469
  %v471 = vrot.slane %v470, 1
  %v472 = vmax.f32 %v470, %v471
  %v473 = vsel %vm199, %v154, -inf
  %v474 = vrot.slane %v473, 4
  %v475 = vmax.f32 %v473, %v474
  %v476 = vrot.slane %v475, 2
  %v477 = vmax.f32 %v475, %v476
  %v478 = vrot.slane %v477, 1
  %v479 = vmax.f32 %v477, %v478
  %v480 = vsel %vm199, %v83, -inf
  %v481 = vrot.slane %v480, 4
  %v482 = vmax.f32 %v480, %v481
  %v483 = vrot.slane %v482, 2
  %v484 = vmax.f32 %v482, %v483
  %v485 = vrot.slane %v484, 1
  %v486 = vmax.f32 %v484, %v485
  %v487 = vsel %vm199, %v155, -inf
  %v488 = vrot.slane %v487, 4
  %v489 = vmax.f32 %v487, %v488
  %v490 = vrot.slane %v489, 2
  %v491 = vmax.f32 %v489, %v490
  %v492 = vrot.slane %v491, 1
  %v493 = vmax.f32 %v491, %v492
  %v494 = vsel %vm199, %v84, -inf
  %v495 = vrot.slane %v494, 4
  %v496 = vmax.f32 %v494, %v495
  %v497 = vrot.slane %v496, 2
  %v498 = vmax.f32 %v496, %v497
  %v499 = vrot.slane %v498, 1
  %v500 = vmax.f32 %v498, %v499
  %v501 = vsel %vm199, %v156, -inf
  %v502 = vrot.slane %v501, 4
  %v503 = vmax.f32 %v501, %v502
  %v504 = vrot.slane %v503, 2
  %v505 = vmax.f32 %v503, %v504
  %v506 = vrot.slane %v505, 1
  %v507 = vmax.f32 %v505, %v506
  %v508 = vsel %vm199, %v85, -inf
  %v509 = vrot.slane %v508, 4
  %v510 = vmax.f32 %v508, %v509
  %v511 = vrot.slane %v510, 2
  %v512 = vmax.f32 %v510, %v511
  %v513 = vrot.slane %v512, 1
  %v514 = vmax.f32 %v512, %v513
  %v515 = vsel %vm199, %v157, -inf
  %v516 = vrot.slane %v515, 4
  %v517 = vmax.f32 %v515, %v516
  %v518 = vrot.slane %v517, 2
  %v519 = vmax.f32 %v517, %v518
  %v520 = vrot.slane %v519, 1
  %v521 = vmax.f32 %v519, %v520
  %v522 = vsel %vm199, %v86, -inf
  %v523 = vrot.slane %v522, 4
  %v524 = vmax.f32 %v522, %v523
  %v525 = vrot.slane %v524, 2
  %v526 = vmax.f32 %v524, %v525
  %v527 = vrot.slane %v526, 1
  %v528 = vmax.f32 %v526, %v527
  %v529 = vsel %vm199, %v158, -inf
  %v530 = vrot.slane %v529, 4
  %v531 = vmax.f32 %v529, %v530
  %v532 = vrot.slane %v531, 2
  %v533 = vmax.f32 %v531, %v532
  %v534 = vrot.slane %v533, 1
  %v535 = vmax.f32 %v533, %v534
  %v536 = vsel %vm199, %v87, -inf
  %v537 = vrot.slane %v536, 4
  %v538 = vmax.f32 %v536, %v537
  %v539 = vrot.slane %v538, 2
  %v540 = vmax.f32 %v538, %v539
  %v541 = vrot.slane %v540, 1
  %v542 = vmax.f32 %v540, %v541
  %v543 = vsel %vm199, %v159, -inf
  %v544 = vrot.slane %v543, 4
  %v545 = vmax.f32 %v543, %v544
  %v546 = vrot.slane %v545, 2
  %v547 = vmax.f32 %v545, %v546
  %v548 = vrot.slane %v547, 1
  %v549 = vmax.f32 %v547, %v548
  %v550 = vsel %vm199, %v88, -inf
  %v551 = vrot.slane %v550, 4
  %v552 = vmax.f32 %v550, %v551
  %v553 = vrot.slane %v552, 2
  %v554 = vmax.f32 %v552, %v553
  %v555 = vrot.slane %v554, 1
  %v556 = vmax.f32 %v554, %v555
  %v557 = vsel %vm199, %v160, -inf
  %v558 = vrot.slane %v557, 4
  %v559 = vmax.f32 %v557, %v558
  %v560 = vrot.slane %v559, 2
  %v561 = vmax.f32 %v559, %v560
  %v562 = vrot.slane %v561, 1
  %v563 = vmax.f32 %v561, %v562
  %v564 = vsel %vm199, %v89, -inf
  %v565 = vrot.slane %v564, 4
  %v566 = vmax.f32 %v564, %v565
  %v567 = vrot.slane %v566, 2
  %v568 = vmax.f32 %v566, %v567
  %v569 = vrot.slane %v568, 1
  %v570 = vmax.f32 %v568, %v569
  %v571 = vsel %vm199, %v161, -inf
  %v572 = vrot.slane %v571, 4
  %v573 = vmax.f32 %v571, %v572
  %v574 = vrot.slane %v573, 2
  %v575 = vmax.f32 %v573, %v574
  %v576 = vrot.slane %v575, 1
  %v577 = vmax.f32 %v575, %v576
  %v578 = vsel %vm199, %v90, -inf
  %v579 = vrot.slane %v578, 4
  %v580 = vmax.f32 %v578, %v579
  %v581 = vrot.slane %v580, 2
  %v582 = vmax.f32 %v580, %v581
  %v583 = vrot.slane %v582, 1
  %v584 = vmax.f32 %v582, %v583
  %v585 = vsel %vm199, %v162, -inf
  %v586 = vrot.slane %v585, 4
  %v587 = vmax.f32 %v585, %v586
  %v588 = vrot.slane %v587, 2
  %v589 = vmax.f32 %v587, %v588
  %v590 = vrot.slane %v589, 1
  %v591 = vmax.f32 %v589, %v590
  %v592 = vsel %vm199, %v91, -inf
  %v593 = vrot.slane %v592, 4
  %v594 = vmax.f32 %v592, %v593
  %v595 = vrot.slane %v594, 2
  %v596 = vmax.f32 %v594, %v595
  %v597 = vrot.slane %v596, 1
  %v598 = vmax.f32 %v596, %v597
  %v599 = vsel %vm199, %v163, -inf
  %v600 = vrot.slane %v599, 4
  %v601 = vmax.f32 %v599, %v600
  %v602 = vrot.slane %v601, 2
  %v603 = vmax.f32 %v601, %v602
  %v604 = vrot.slane %v603, 1
  %v605 = vmax.f32 %v603, %v604
  %v606 = vsel %vm199, %v92, -inf
  %v607 = vrot.slane %v606, 4
  %v608 = vmax.f32 %v606, %v607
  %v609 = vrot.slane %v608, 2
  %v610 = vmax.f32 %v608, %v609
  %v611 = vrot.slane %v610, 1
  %v612 = vmax.f32 %v610, %v611
  %v613 = vsel %vm199, %v164, -inf
  %v614 = vrot.slane %v613, 4
  %v615 = vmax.f32 %v613, %v614
  %v616 = vrot.slane %v615, 2
  %v617 = vmax.f32 %v615, %v616
  %v618 = vrot.slane %v617, 1
  %v619 = vmax.f32 %v617, %v618
  %v620 = vsel %vm199, %v93, -inf
  %v621 = vrot.slane %v620, 4
  %v622 = vmax.f32 %v620, %v621
  %v623 = vrot.slane %v622, 2
  %v624 = vmax.f32 %v622, %v623
  %v625 = vrot.slane %v624, 1
  %v626 = vmax.f32 %v624, %v625
  %v627 = vsel %vm199, %v165, -inf
  %v628 = vrot.slane %v627, 4
  %v629 = vmax.f32 %v627, %v628
  %v630 = vrot.slane %v629, 2
  %v631 = vmax.f32 %v629, %v630
  %v632 = vrot.slane %v631, 1
  %v633 = vmax.f32 %v631, %v632
  %v634 = vsel %vm199, %v94, -inf
  %v635 = vrot.slane %v634, 4
  %v636 = vmax.f32 %v634, %v635
  %v637 = vrot.slane %v636, 2
  %v638 = vmax.f32 %v636, %v637
  %v639 = vrot.slane %v638, 1
  %v640 = vmax.f32 %v638, %v639
  %v641 = vsel %vm199, %v166, -inf
  %v642 = vrot.slane %v641, 4
  %v643 = vmax.f32 %v641, %v642
  %v644 = vrot.slane %v643, 2
  %v645 = vmax.f32 %v643, %v644
  %v646 = vrot.slane %v645, 1
  %v647 = vmax.f32 %v645, %v646
  %v712 = vcombine.low %v206, %v213
  %v713 = vcombine.low %v220, %v227
  %v714 = vcombine.low %v234, %v241
  %v715 = vcombine.low %v248, %v255
  %v716 = vcombine.low %v262, %v269
  %v717 = vcombine.low %v276, %v283
  %v718 = vcombine.low %v290, %v297
  %v719 = vcombine.low %v304, %v311
  %v720 = vcombine.low %v318, %v325
  %v721 = vcombine.low %v332, %v339
  %v722 = vcombine.low %v346, %v353
  %v723 = vcombine.low %v360, %v367
  %v724 = vcombine.low %v374, %v381
  %v725 = vcombine.low %v388, %v395
  %v726 = vcombine.low %v402, %v409
  %v727 = vcombine.low %v416, %v423
  %v728 = vcombine.low %v430, %v437
  %v729 = vcombine.low %v444, %v451
  %v730 = vcombine.low %v458, %v465
  %v731 = vcombine.low %v472, %v479
  %v732 = vcombine.low %v486, %v493
  %v733 = vcombine.low %v500, %v507
  %v734 = vcombine.low %v514, %v521
  %v735 = vcombine.low %v528, %v535
  %v736 = vcombine.low %v542, %v549
  %v737 = vcombine.low %v556, %v563
  %v738 = vcombine.low %v570, %v577
  %v739 = vcombine.low %v584, %v591
  %v740 = vcombine.low %v598, %v605
  %v741 = vcombine.low %v612, %v619
  %v742 = vcombine.low %v626, %v633
  %v743 = vcombine.low %v640, %v647
  %v776 = vsub.f32 %v63, %v712
  %v777 = vsub.f32 %v64, %v713
  %v778 = vsub.f32 %v65, %v714
  %v779 = vsub.f32 %v66, %v715
  %v780 = vsub.f32 %v67, %v716
  %v781 = vsub.f32 %v68, %v717
  %v782 = vsub.f32 %v69, %v718
  %v783 = vsub.f32 %v70, %v719
  %v784 = vsub.f32 %v71, %v720
  %v785 = vsub.f32 %v72, %v721
  %v786 = vsub.f32 %v73, %v722
  %v787 = vsub.f32 %v74, %v723
  %v788 = vsub.f32 %v75, %v724
  %v789 = vsub.f32 %v76, %v725
  %v790 = vsub.f32 %v77, %v726
  %v791 = vsub.f32 %v78, %v727
  %v792 = vsub.f32 %v79, %v728
  %v793 = vsub.f32 %v80, %v729
  %v794 = vsub.f32 %v81, %v730
  %v795 = vsub.f32 %v82, %v731
  %v796 = vsub.f32 %v83, %v732
  %v797 = vsub.f32 %v84, %v733
  %v798 = vsub.f32 %v85, %v734
  %v799 = vsub.f32 %v86, %v735
  %v800 = vsub.f32 %v87, %v736
  %v801 = vsub.f32 %v88, %v737
  %v802 = vsub.f32 %v89, %v738
  %v803 = vsub.f32 %v90, %v739
  %v804 = vsub.f32 %v91, %v740
  %v805 = vsub.f32 %v92, %v741
  %v806 = vsub.f32 %v93, %v742
  %v807 = vsub.f32 %v94, %v743
  %v808 = vmul.f32 %v776, 1.442695
  %v809 = vpow.pop %v808
  %v810 = vmul.f32 %v777, 1.442695
  %v811 = vpow.pop %v810
  %v812 = vmul.f32 %v778, 1.442695
  %v813 = vpow.pop %v812
  %v814 = vmul.f32 %v779, 1.442695
  %v815 = vpow.pop %v814
  %v816 = vmul.f32 %v780, 1.442695
  %v817 = vpow.pop %v816
  %v818 = vmul.f32 %v781, 1.442695
  %v819 = vpow.pop %v818
  %v820 = vmul.f32 %v782, 1.442695
  %v821 = vpow.pop %v820
  %v822 = vmul.f32 %v783, 1.442695
  %v823 = vpow.pop %v822
  %v824 = vmul.f32 %v784, 1.442695
  %v825 = vpow.pop %v824
  %v826 = vmul.f32 %v785, 1.442695
  %v827 = vpow.pop %v826
  %v828 = vmul.f32 %v786, 1.442695
  %v829 = vpow.pop %v828
  %v830 = vmul.f32 %v787, 1.442695
  %v831 = vpow.pop %v830
  %v832 = vmul.f32 %v788, 1.442695
  %v833 = vpow.pop %v832
  %v834 = vmul.f32 %v789, 1.442695
  %v835 = vpow.pop %v834
  %v836 = vmul.f32 %v790, 1.442695
  %v837 = vpow.pop %v836
  %v838 = vmul.f32 %v791, 1.442695
  %v839 = vpow.pop %v838
  %v840 = vmul.f32 %v792, 1.442695
  %v841 = vpow.pop %v840
  %v842 = vmul.f32 %v793, 1.442695
  %v843 = vpow.pop %v842
  %v844 = vmul.f32 %v794, 1.442695
  %v845 = vpow.pop %v844
  %v846 = vmul.f32 %v795, 1.442695
  %v847 = vpow.pop %v846
  %v848 = vmul.f32 %v796, 1.442695
  %v849 = vpow.pop %v848
  %v850 = vmul.f32 %v797, 1.442695
  %v851 = vpow.pop %v850
  %v852 = vmul.f32 %v798, 1.442695
  %v853 = vpow.pop %v852
  %v854 = vmul.f32 %v799, 1.442695
  %v855 = vpow.pop %v854
  %v856 = vmul.f32 %v800, 1.442695
  %v857 = vpow.pop %v856
  %v858 = vmul.f32 %v801, 1.442695
  %v859 = vpow.pop %v858
  %v860 = vmul.f32 %v802, 1.442695
  %v861 = vpow.pop %v860
  %v862 = vmul.f32 %v803, 1.442695
  %v863 = vpow.pop %v862
  %v864 = vmul.f32 %v804, 1.442695
  %v865 = vpow.pop %v864
  %v866 = vmul.f32 %v805, 1.442695
  %v867 = vpow.pop %v866
  %v868 = vmul.f32 %v806, 1.442695
  %v869 = vpow.pop %v868
  %v870 = vmul.f32 %v807, 1.442695
  %v871 = vpow.pop %v870
  %v904 = vcombine.high %v809, %v809
  %v905 = vcombine.high %v811, %v811
  %v906 = vcombine.high %v813, %v813
  %v907 = vcombine.high %v815, %v815
  %v908 = vcombine.high %v817, %v817
  %v909 = vcombine.high %v819, %v819
  %v910 = vcombine.high %v821, %v821
  %v911 = vcombine.high %v823, %v823
  %v912 = vcombine.high %v825, %v825
  %v913 = vcombine.high %v827, %v827
  %v914 = vcombine.high %v829, %v829
  %v915 = vcombine.high %v831, %v831
  %v916 = vcombine.high %v833, %v833
  %v917 = vcombine.high %v835, %v835
  %v918 = vcombine.high %v837, %v837
  %v919 = vcombine.high %v839, %v839
  %v920 = vcombine.high %v841, %v841
  %v921 = vcombine.high %v843, %v843
  %v922 = vcombine.high %v845, %v845
  %v923 = vcombine.high %v847, %v847
  %v924 = vcombine.high %v849, %v849
  %v925 = vcombine.high %v851, %v851
  %v926 = vcombine.high %v853, %v853
  %v927 = vcombine.high %v855, %v855
  %v928 = vcombine.high %v857, %v857
  %v929 = vcombine.high %v859, %v859
  %v930 = vcombine.high %v861, %v861
  %v931 = vcombine.high %v863, %v863
  %v932 = vcombine.high %v865, %v865
  %v933 = vcombine.high %v867, %v867
  %v934 = vcombine.high %v869, %v869
  %v935 = vcombine.high %v871, %v871
  %v968 = vsel %vm199, %v809, 0.0
  %v969 = vrot.slane %v968, 4
  %v970 = vadd.f32 %v968, %v969
  %v971 = vrot.slane %v970, 2
  %v972 = vadd.f32 %v970, %v971
  %v973 = vrot.slane %v972, 1
  %v974 = vadd.f32 %v972, %v973
  %v975 = vsel %vm199, %v904, 0.0
  %v976 = vrot.slane %v975, 4
  %v977 = vadd.f32 %v975, %v976
  %v978 = vrot.slane %v977, 2
  %v979 = vadd.f32 %v977, %v978
  %v980 = vrot.slane %v979, 1
  %v981 = vadd.f32 %v979, %v980
  %v982 = vsel %vm199, %v811, 0.0
  %v983 = vrot.slane %v982, 4
  %v984 = vadd.f32 %v982, %v983
  %v985 = vrot.slane %v984, 2
  %v986 = vadd.f32 %v984, %v985
  %v987 = vrot.slane %v986, 1
  %v988 = vadd.f32 %v986, %v987
  %v989 = vsel %vm199, %v905, 0.0
  %v990 = vrot.slane %v989, 4
  %v991 = vadd.f32 %v989, %v990
  %v992 = vrot.slane %v991, 2
  %v993 = vadd.f32 %v991, %v992
  %v994 = vrot.slane %v993, 1
  %v995 = vadd.f32 %v993, %v994
  %v996 = vsel %vm199, %v813, 0.0
  %v997 = vrot.slane %v996, 4
  %v998 = vadd.f32 %v996, %v997
  %v999 = vrot.slane %v998, 2
  %v1000 = vadd.f32 %v998, %v999
  %v1001 = vrot.slane %v1000, 1
  %v1002 = vadd.f32 %v1000, %v1001
  %v1003 = vsel %vm199, %v906, 0.0
  %v1004 = vrot.slane %v1003, 4
  %v1005 = vadd.f32 %v1003, %v1004
  %v1006 = vrot.slane %v1005, 2
  %v1007 = vadd.f32 %v1005, %v1006
  %v1008 = vrot.slane %v1007, 1
  %v1009 = vadd.f32 %v1007, %v1008
  %v1010 = vsel %vm199, %v815, 0.0
  %v1011 = vrot.slane %v1010, 4
  %v1012 = vadd.f32 %v1010, %v1011
  %v1013 = vrot.slane %v1012, 2
  %v1014 = vadd.f32 %v1012, %v1013
  %v1015 = vrot.slane %v1014, 1
  %v1016 = vadd.f32 %v1014, %v1015
  %v1017 = vsel %vm199, %v907, 0.0
  %v1018 = vrot.slane %v1017, 4
  %v1019 = vadd.f32 %v1017, %v1018
  %v1020 = vrot.slane %v1019, 2
  %v1021 = vadd.f32 %v1019, %v1020
  %v1022 = vrot.slane %v1021, 1
  %v1023 = vadd.f32 %v1021, %v1022
  %v1024 = vsel %vm199, %v817, 0.0
  %v1025 = vrot.slane %v1024, 4
  %v1026 = vadd.f32 %v1024, %v1025
  %v1027 = vrot.slane %v1026, 2
  %v1028 = vadd.f32 %v1026, %v1027
  %v1029 = vrot.slane %v1028, 1
  %v1030 = vadd.f32 %v1028, %v1029
  %v1031 = vsel %vm199, %v908, 0.0
  %v1032 = vrot.slane %v1031, 4
  %v1033 = vadd.f32 %v1031, %v1032
  %v1034 = vrot.slane %v1033, 2
  %v1035 = vadd.f32 %v1033, %v1034
  %v1036 = vrot.slane %v1035, 1
  %v1037 = vadd.f32 %v1035, %v1036
  %v1038 = vsel %vm199, %v819, 0.0
  %v1039 = vrot.slane %v1038, 4
  %v1040 = vadd.f32 %v1038, %v1039
  %v1041 = vrot.slane %v1040, 2
  %v1042 = vadd.f32 %v1040, %v1041
  %v1043 = vrot.slane %v1042, 1
  %v1044 = vadd.f32 %v1042, %v1043
  %v1045 = vsel %vm199, %v909, 0.0
  %v1046 = vrot.slane %v1045, 4
  %v1047 = vadd.f32 %v1045, %v1046
  %v1048 = vrot.slane %v1047, 2
  %v1049 = vadd.f32 %v1047, %v1048
  %v1050 = vrot.slane %v1049, 1
  %v1051 = vadd.f32 %v1049, %v1050
  %v1052 = vsel %vm199, %v821, 0.0
  %v1053 = vrot.slane %v1052, 4
  %v1054 = vadd.f32 %v1052, %v1053
  %v1055 = vrot.slane %v1054, 2
  %v1056 = vadd.f32 %v1054, %v1055
  %v1057 = vrot.slane %v1056, 1
  %v1058 = vadd.f32 %v1056, %v1057
  %v1059 = vsel %vm199, %v910, 0.0
  %v1060 = vrot.slane %v1059, 4
  %v1061 = vadd.f32 %v1059, %v1060
  %v1062 = vrot.slane %v1061, 2
  %v1063 = vadd.f32 %v1061, %v1062
  %v1064 = vrot.slane %v1063, 1
  %v1065 = vadd.f32 %v1063, %v1064
  %v1066 = vsel %vm199, %v823, 0.0
  %v1067 = vrot.slane %v1066, 4
  %v1068 = vadd.f32 %v1066, %v1067
  %v1069 = vrot.slane %v1068, 2
  %v1070 = vadd.f32 %v1068, %v1069
  %v1071 = vrot.slane %v1070, 1
  %v1072 = vadd.f32 %v1070, %v1071
  %v1073 = vsel %vm199, %v911, 0.0
  %v1074 = vrot.slane %v1073, 4
  %v1075 = vadd.f32 %v1073, %v1074
  %v1076 = vrot.slane %v1075, 2
  %v1077 = vadd.f32 %v1075, %v1076
  %v1078 = vrot.slane %v1077, 1
  %v1079 = vadd.f32 %v1077, %v1078
  %v1080 = vsel %vm199, %v825, 0.0
  %v1081 = vrot.slane %v1080, 4
  %v1082 = vadd.f32 %v1080, %v1081
  %v1083 = vrot.slane %v1082, 2
  %v1084 = vadd.f32 %v1082, %v1083
  %v1085 = vrot.slane %v1084, 1
  %v1086 = vadd.f32 %v1084, %v1085
  %v1087 = vsel %vm199, %v912, 0.0
  %v1088 = vrot.slane %v1087, 4
  %v1089 = vadd.f32 %v1087, %v1088
  %v1090 = vrot.slane %v1089, 2
  %v1091 = vadd.f32 %v1089, %v1090
  %v1092 = vrot.slane %v1091, 1
  %v1093 = vadd.f32 %v1091, %v1092
  %v1094 = vsel %vm199, %v827, 0.0
  %v1095 = vrot.slane %v1094, 4
  %v1096 = vadd.f32 %v1094, %v1095
  %v1097 = vrot.slane %v1096, 2
  %v1098 = vadd.f32 %v1096, %v1097
  %v1099 = vrot.slane %v1098, 1
  %v1100 = vadd.f32 %v1098, %v1099
  %v1101 = vsel %vm199, %v913, 0.0
  %v1102 = vrot.slane %v1101, 4
  %v1103 = vadd.f32 %v1101, %v1102
  %v1104 = vrot.slane %v1103, 2
  %v1105 = vadd.f32 %v1103, %v1104
  %v1106 = vrot.slane %v1105, 1
  %v1107 = vadd.f32 %v1105, %v1106
  %v1108 = vsel %vm199, %v829, 0.0
  %v1109 = vrot.slane %v1108, 4
  %v1110 = vadd.f32 %v1108, %v1109
  %v1111 = vrot.slane %v1110, 2
  %v1112 = vadd.f32 %v1110, %v1111
  %v1113 = vrot.slane %v1112, 1
  %v1114 = vadd.f32 %v1112, %v1113
  %v1115 = vsel %vm199, %v914, 0.0
  %v1116 = vrot.slane %v1115, 4
  %v1117 = vadd.f32 %v1115, %v1116
  %v1118 = vrot.slane %v1117, 2
  %v1119 = vadd.f32 %v1117, %v1118
  %v1120 = vrot.slane %v1119, 1
  %v1121 = vadd.f32 %v1119, %v1120
  %v1122 = vsel %vm199, %v831, 0.0
  %v1123 = vrot.slane %v1122, 4
  %v1124 = vadd.f32 %v1122, %v1123
  %v1125 = vrot.slane %v1124, 2
  %v1126 = vadd.f32 %v1124, %v1125
  %v1127 = vrot.slane %v1126, 1
  %v1128 = vadd.f32 %v1126, %v1127
  %v1129 = vsel %vm199, %v915, 0.0
  %v1130 = vrot.slane %v1129, 4
  %v1131 = vadd.f32 %v1129, %v1130
  %v1132 = vrot.slane %v1131, 2
  %v1133 = vadd.f32 %v1131, %v1132
  %v1134 = vrot.slane %v1133, 1
  %v1135 = vadd.f32 %v1133, %v1134
  %v1136 = vsel %vm199, %v833, 0.0
  %v1137 = vrot.slane %v1136, 4
  %v1138 = vadd.f32 %v1136, %v1137
  %v1139 = vrot.slane %v1138, 2
  %v1140 = vadd.f32 %v1138, %v1139
  %v1141 = vrot.slane %v1140, 1
  %v1142 = vadd.f32 %v1140, %v1141
  %v1143 = vsel %vm199, %v916, 0.0
  %v1144 = vrot.slane %v1143, 4
  %v1145 = vadd.f32 %v1143, %v1144
  %v1146 = vrot.slane %v1145, 2
  %v1147 = vadd.f32 %v1145, %v1146
  %v1148 = vrot.slane %v1147, 1
  %v1149 = vadd.f32 %v1147, %v1148
  %v1150 = vsel %vm199, %v835, 0.0
  %v1151 = vrot.slane %v1150, 4
  %v1152 = vadd.f32 %v1150, %v1151
  %v1153 = vrot.slane %v1152, 2
  %v1154 = vadd.f32 %v1152, %v1153
  %v1155 = vrot.slane %v1154, 1
  %v1156 = vadd.f32 %v1154, %v1155
  %v1157 = vsel %vm199, %v917, 0.0
  %v1158 = vrot.slane %v1157, 4
  %v1159 = vadd.f32 %v1157, %v1158
  %v1160 = vrot.slane %v1159, 2
  %v1161 = vadd.f32 %v1159, %v1160
  %v1162 = vrot.slane %v1161, 1
  %v1163 = vadd.f32 %v1161, %v1162
  %v1164 = vsel %vm199, %v837, 0.0
  %v1165 = vrot.slane %v1164, 4
  %v1166 = vadd.f32 %v1164, %v1165
  %v1167 = vrot.slane %v1166, 2
  %v1168 = vadd.f32 %v1166, %v1167
  %v1169 = vrot.slane %v1168, 1
  %v1170 = vadd.f32 %v1168, %v1169
  %v1171 = vsel %vm199, %v918, 0.0
  %v1172 = vrot.slane %v1171, 4
  %v1173 = vadd.f32 %v1171, %v1172
  %v1174 = vrot.slane %v1173, 2
  %v1175 = vadd.f32 %v1173, %v1174
  %v1176 = vrot.slane %v1175, 1
  %v1177 = vadd.f32 %v1175, %v1176
  %v1178 = vsel %vm199, %v839, 0.0
  %v1179 = vrot.slane %v1178, 4
  %v1180 = vadd.f32 %v1178, %v1179
  %v1181 = vrot.slane %v1180, 2
  %v1182 = vadd.f32 %v1180, %v1181
  %v1183 = vrot.slane %v1182, 1
  %v1184 = vadd.f32 %v1182, %v1183
  %v1185 = vsel %vm199, %v919, 0.0
  %v1186 = vrot.slane %v1185, 4
  %v1187 = vadd.f32 %v1185, %v1186
  %v1188 = vrot.slane %v1187, 2
  %v1189 = vadd.f32 %v1187, %v1188
  %v1190 = vrot.slane %v1189, 1
  %v1191 = vadd.f32 %v1189, %v1190
  %v1192 = vsel %vm199, %v841, 0.0
  %v1193 = vrot.slane %v1192, 4
  %v1194 = vadd.f32 %v1192, %v1193
  %v1195 = vrot.slane %v1194, 2
  %v1196 = vadd.f32 %v1194, %v1195
  %v1197 = vrot.slane %v1196, 1
  %v1198 = vadd.f32 %v1196, %v1197
  %v1199 = vsel %vm199, %v920, 0.0
  %v1200 = vrot.slane %v1199, 4
  %v1201 = vadd.f32 %v1199, %v1200
  %v1202 = vrot.slane %v1201, 2
  %v1203 = vadd.f32 %v1201, %v1202
  %v1204 = vrot.slane %v1203, 1
  %v1205 = vadd.f32 %v1203, %v1204
  %v1206 = vsel %vm199, %v843, 0.0
  %v1207 = vrot.slane %v1206, 4
  %v1208 = vadd.f32 %v1206, %v1207
  %v1209 = vrot.slane %v1208, 2
  %v1210 = vadd.f32 %v1208, %v1209
  %v1211 = vrot.slane %v1210, 1
  %v1212 = vadd.f32 %v1210, %v1211
  %v1213 = vsel %vm199, %v921, 0.0
  %v1214 = vrot.slane %v1213, 4
  %v1215 = vadd.f32 %v1213, %v1214
  %v1216 = vrot.slane %v1215, 2
  %v1217 = vadd.f32 %v1215, %v1216
  %v1218 = vrot.slane %v1217, 1
  %v1219 = vadd.f32 %v1217, %v1218
  %v1220 = vsel %vm199, %v845, 0.0
  %v1221 = vrot.slane %v1220, 4
  %v1222 = vadd.f32 %v1220, %v1221
  %v1223 = vrot.slane %v1222, 2
  %v1224 = vadd.f32 %v1222, %v1223
  %v1225 = vrot.slane %v1224, 1
  %v1226 = vadd.f32 %v1224, %v1225
  %v1227 = vsel %vm199, %v922, 0.0
  %v1228 = vrot.slane %v1227, 4
  %v1229 = vadd.f32 %v1227, %v1228
  %v1230 = vrot.slane %v1229, 2
  %v1231 = vadd.f32 %v1229, %v1230
  %v1232 = vrot.slane %v1231, 1
  %v1233 = vadd.f32 %v1231, %v1232
  %v1234 = vsel %vm199, %v847, 0.0
  %v1235 = vrot.slane %v1234, 4
  %v1236 = vadd.f32 %v1234, %v1235
  %v1237 = vrot.slane %v1236, 2
  %v1238 = vadd.f32 %v1236, %v1237
  %v1239 = vrot.slane %v1238, 1
  %v1240 = vadd.f32 %v1238, %v1239
  %v1241 = vsel %vm199, %v923, 0.0
  %v1242 = vrot.slane %v1241, 4
  %v1243 = vadd.f32 %v1241, %v1242
  %v1244 = vrot.slane %v1243, 2
  %v1245 = vadd.f32 %v1243, %v1244
  %v1246 = vrot.slane %v1245, 1
  %v1247 = vadd.f32 %v1245, %v1246
  %v1248 = vsel %vm199, %v849, 0.0
  %v1249 = vrot.slane %v1248, 4
  %v1250 = vadd.f32 %v1248, %v1249
  %v1251 = vrot.slane %v1250, 2
  %v1252 = vadd.f32 %v1250, %v1251
  %v1253 = vrot.slane %v1252, 1
  %v1254 = vadd.f32 %v1252, %v1253
  %v1255 = vsel %vm199, %v924, 0.0
  %v1256 = vrot.slane %v1255, 4
  %v1257 = vadd.f32 %v1255, %v1256
  %v1258 = vrot.slane %v1257, 2
  %v1259 = vadd.f32 %v1257, %v1258
  %v1260 = vrot.slane %v1259, 1
  %v1261 = vadd.f32 %v1259, %v1260
  %v1262 = vsel %vm199, %v851, 0.0
  %v1263 = vrot.slane %v1262, 4
  %v1264 = vadd.f32 %v1262, %v1263
  %v1265 = vrot.slane %v1264, 2
  %v1266 = vadd.f32 %v1264, %v1265
  %v1267 = vrot.slane %v1266, 1
  %v1268 = vadd.f32 %v1266, %v1267
  %v1269 = vsel %vm199, %v925, 0.0
  %v1270 = vrot.slane %v1269, 4
  %v1271 = vadd.f32 %v1269, %v1270
  %v1272 = vrot.slane %v1271, 2
  %v1273 = vadd.f32 %v1271, %v1272
  %v1274 = vrot.slane %v1273, 1
  %v1275 = vadd.f32 %v1273, %v1274
  %v1276 = vsel %vm199, %v853, 0.0
  %v1277 = vrot.slane %v1276, 4
  %v1278 = vadd.f32 %v1276, %v1277
  %v1279 = vrot.slane %v1278, 2
  %v1280 = vadd.f32 %v1278, %v1279
  %v1281 = vrot.slane %v1280, 1
  %v1282 = vadd.f32 %v1280, %v1281
  %v1283 = vsel %vm199, %v926, 0.0
  %v1284 = vrot.slane %v1283, 4
  %v1285 = vadd.f32 %v1283, %v1284
  %v1286 = vrot.slane %v1285, 2
  %v1287 = vadd.f32 %v1285, %v1286
  %v1288 = vrot.slane %v1287, 1
  %v1289 = vadd.f32 %v1287, %v1288
  %v1290 = vsel %vm199, %v855, 0.0
  %v1291 = vrot.slane %v1290, 4
  %v1292 = vadd.f32 %v1290, %v1291
  %v1293 = vrot.slane %v1292, 2
  %v1294 = vadd.f32 %v1292, %v1293
  %v1295 = vrot.slane %v1294, 1
  %v1296 = vadd.f32 %v1294, %v1295
  %v1297 = vsel %vm199, %v927, 0.0
  %v1298 = vrot.slane %v1297, 4
  %v1299 = vadd.f32 %v1297, %v1298
  %v1300 = vrot.slane %v1299, 2
  %v1301 = vadd.f32 %v1299, %v1300
  %v1302 = vrot.slane %v1301, 1
  %v1303 = vadd.f32 %v1301, %v1302
  %v1304 = vsel %vm199, %v857, 0.0
  %v1305 = vrot.slane %v1304, 4
  %v1306 = vadd.f32 %v1304, %v1305
  %v1307 = vrot.slane %v1306, 2
  %v1308 = vadd.f32 %v1306, %v1307
  %v1309 = vrot.slane %v1308, 1
  %v1310 = vadd.f32 %v1308, %v1309
  %v1311 = vsel %vm199, %v928, 0.0
  %v1312 = vrot.slane %v1311, 4
  %v1313 = vadd.f32 %v1311, %v1312
  %v1314 = vrot.slane %v1313, 2
  %v1315 = vadd.f32 %v1313, %v1314
  %v1316 = vrot.slane %v1315, 1
  %v1317 = vadd.f32 %v1315, %v1316
  %v1318 = vsel %vm199, %v859, 0.0
  %v1319 = vrot.slane %v1318, 4
  %v1320 = vadd.f32 %v1318, %v1319
  %v1321 = vrot.slane %v1320, 2
  %v1322 = vadd.f32 %v1320, %v1321
  %v1323 = vrot.slane %v1322, 1
  %v1324 = vadd.f32 %v1322, %v1323
  %v1325 = vsel %vm199, %v929, 0.0
  %v1326 = vrot.slane %v1325, 4
  %v1327 = vadd.f32 %v1325, %v1326
  %v1328 = vrot.slane %v1327, 2
  %v1329 = vadd.f32 %v1327, %v1328
  %v1330 = vrot.slane %v1329, 1
  %v1331 = vadd.f32 %v1329, %v1330
  %v1332 = vsel %vm199, %v861, 0.0
  %v1333 = vrot.slane %v1332, 4
  %v1334 = vadd.f32 %v1332, %v1333
  %v1335 = vrot.slane %v1334, 2
  %v1336 = vadd.f32 %v1334, %v1335
  %v1337 = vrot.slane %v1336, 1
  %v1338 = vadd.f32 %v1336, %v1337
  %v1339 = vsel %vm199, %v930, 0.0
  %v1340 = vrot.slane %v1339, 4
  %v1341 = vadd.f32 %v1339, %v1340
  %v1342 = vrot.slane %v1341, 2
  %v1343 = vadd.f32 %v1341, %v1342
  %v1344 = vrot.slane %v1343, 1
  %v1345 = vadd.f32 %v1343, %v1344
  %v1346 = vsel %vm199, %v863, 0.0
  %v1347 = vrot.slane %v1346, 4
  %v1348 = vadd.f32 %v1346, %v1347
  %v1349 = vrot.slane %v1348, 2
  %v1350 = vadd.f32 %v1348, %v1349
  %v1351 = vrot.slane %v1350, 1
  %v1352 = vadd.f32 %v1350, %v1351
  %v1353 = vsel %vm199, %v931, 0.0
  %v1354 = vrot.slane %v1353, 4
  %v1355 = vadd.f32 %v1353, %v1354
  %v1356 = vrot.slane %v1355, 2
  %v1357 = vadd.f32 %v1355, %v1356
  %v1358 = vrot.slane %v1357, 1
  %v1359 = vadd.f32 %v1357, %v1358
  %v1360 = vsel %vm199, %v865, 0.0
  %v1361 = vrot.slane %v1360, 4
  %v1362 = vadd.f32 %v1360, %v1361
  %v1363 = vrot.slane %v1362, 2
  %v1364 = vadd.f32 %v1362, %v1363
  %v1365 = vrot.slane %v1364, 1
  %v1366 = vadd.f32 %v1364, %v1365
  %v1367 = vsel %vm199, %v932, 0.0
  %v1368 = vrot.slane %v1367, 4
  %v1369 = vadd.f32 %v1367, %v1368
  %v1370 = vrot.slane %v1369, 2
  %v1371 = vadd.f32 %v1369, %v1370
  %v1372 = vrot.slane %v1371, 1
  %v1373 = vadd.f32 %v1371, %v1372
  %v1374 = vsel %vm199, %v867, 0.0
  %v1375 = vrot.slane %v1374, 4
  %v1376 = vadd.f32 %v1374, %v1375
  %v1377 = vrot.slane %v1376, 2
  %v1378 = vadd.f32 %v1376, %v1377
  %v1379 = vrot.slane %v1378, 1
  %v1380 = vadd.f32 %v1378, %v1379
  %v1381 = vsel %vm199, %v933, 0.0
  %v1382 = vrot.slane %v1381, 4
  %v1383 = vadd.f32 %v1381, %v1382
  %v1384 = vrot.slane %v1383, 2
  %v1385 = vadd.f32 %v1383, %v1384
  %v1386 = vrot.slane %v1385, 1
  %v1387 = vadd.f32 %v1385, %v1386
  %v1388 = vsel %vm199, %v869, 0.0
  %v1389 = vrot.slane %v1388, 4
  %v1390 = vadd.f32 %v1388, %v1389
  %v1391 = vrot.slane %v1390, 2
  %v1392 = vadd.f32 %v1390, %v1391
  %v1393 = vrot.slane %v1392, 1
  %v1394 = vadd.f32 %v1392, %v1393
  %v1395 = vsel %vm199, %v934, 0.0
  %v1396 = vrot.slane %v1395, 4
  %v1397 = vadd.f32 %v1395, %v1396
  %v1398 = vrot.slane %v1397, 2
  %v1399 = vadd.f32 %v1397, %v1398
  %v1400 = vrot.slane %v1399, 1
  %v1401 = vadd.f32 %v1399, %v1400
  %v1402 = vsel %vm199, %v871, 0.0
  %v1403 = vrot.slane %v1402, 4
  %v1404 = vadd.f32 %v1402, %v1403
  %v1405 = vrot.slane %v1404, 2
  %v1406 = vadd.f32 %v1404, %v1405
  %v1407 = vrot.slane %v1406, 1
  %v1408 = vadd.f32 %v1406, %v1407
  %v1409 = vsel %vm199, %v935, 0.0
  %v1410 = vrot.slane %v1409, 4
  %v1411 = vadd.f32 %v1409, %v1410
  %v1412 = vrot.slane %v1411, 2
  %v1413 = vadd.f32 %v1411, %v1412
  %v1414 = vrot.slane %v1413, 1
  %v1415 = vadd.f32 %v1413, %v1414
  %v1416 = vrcp.pop %v974
  %v1417 = vrcp.pop %v981
  %v1418 = vrcp.pop %v988
  %v1419 = vrcp.pop %v995
  %v1420 = vrcp.pop %v1002
  %v1421 = vrcp.pop %v1009
  %v1422 = vrcp.pop %v1016
  %v1423 = vrcp.pop %v1023
  %v1424 = vrcp.pop %v1030
  %v1425 = vrcp.pop %v1037
  %v1426 = vrcp.pop %v1044
  %v1427 = vrcp.pop %v1051
  %v1428 = vrcp.pop %v1058
  %v1429 = vrcp.pop %v1065
  %v1430 = vrcp.pop %v1072
  %v1431 = vrcp.pop %v1079
  %v1432 = vrcp.pop %v1086
  %v1433 = vrcp.pop %v1093
  %v1434 = vrcp.pop %v1100
  %v1435 = vrcp.pop %v1107
  %v1436 = vrcp.pop %v1114
  %v1437 = vrcp.pop %v1121
  %v1438 = vrcp.pop %v1128
  %v1439 = vrcp.pop %v1135
  %v1440 = vrcp.pop %v1142
  %v1441 = vrcp.pop %v1149
  %v1442 = vrcp.pop %v1156
  %v1443 = vrcp.pop %v1163
  %v1444 = vrcp.pop %v1170
  %v1445 = vrcp.pop %v1177
  %v1446 = vrcp.pop %v1184
  %v1447 = vrcp.pop %v1191
  %v1448 = vrcp.pop %v1198
  %v1449 = vrcp.pop %v1205
  %v1450 = vrcp.pop %v1212
  %v1451 = vrcp.pop %v1219
  %v1452 = vrcp.pop %v1226
  %v1453 = vrcp.pop %v1233
  %v1454 = vrcp.pop %v1240
  %v1455 = vrcp.pop %v1247
  %v1456 = vrcp.pop %v1254
  %v1457 = vrcp.pop %v1261
  %v1458 = vrcp.pop %v1268
  %v1459 = vrcp.pop %v1275
  %v1460 = vrcp.pop %v1282
  %v1461 = vrcp.pop %v1289
  %v1462 = vrcp.pop %v1296
  %v1463 = vrcp.pop %v1303
  %v1464 = vrcp.pop %v1310
  %v1465 = vrcp.pop %v1317
  %v1466 = vrcp.pop %v1324
  %v1467 = vrcp.pop %v1331
  %v1468 = vrcp.pop %v1338
  %v1469 = vrcp.pop %v1345
  %v1470 = vrcp.pop %v1352
  %v1471 = vrcp.pop %v1359
  %v1472 = vrcp.pop %v1366
  %v1473 = vrcp.pop %v1373
  %v1474 = vrcp.pop %v1380
  %v1475 = vrcp.pop %v1387
  %v1476 = vrcp.pop %v1394
  %v1477 = vrcp.pop %v1401
  %v1478 = vrcp.pop %v1408
  %v1479 = vrcp.pop %v1415
  %v1544 = vcombine.low %v1416, %v1417
  %v1545 = vcombine.low %v1418, %v1419
  %v1546 = vcombine.low %v1420, %v1421
  %v1547 = vcombine.low %v1422, %v1423
  %v1548 = vcombine.low %v1424, %v1425
  %v1549 = vcombine.low %v1426, %v1427
  %v1550 = vcombine.low %v1428, %v1429
  %v1551 = vcombine.low %v1430, %v1431
  %v1552 = vcombine.low %v1432, %v1433
  %v1553 = vcombine.low %v1434, %v1435
  %v1554 = vcombine.low %v1436, %v1437
  %v1555 = vcombine.low %v1438, %v1439
  %v1556 = vcombine.low %v1440, %v1441
  %v1557 = vcombine.low %v1442, %v1443
  %v1558 = vcombine.low %v1444, %v1445
  %v1559 = vcombine.low %v1446, %v1447
  %v1560 = vcombine.low %v1448, %v1449
  %v1561 = vcombine.low %v1450, %v1451
  %v1562 = vcombine.low %v1452, %v1453
  %v1563 = vcombine.low %v1454, %v1455
  %v1564 = vcombine.low %v1456, %v1457
  %v1565 = vcombine.low %v1458, %v1459
  %v1566 = vcombine.low %v1460, %v1461
  %v1567 = vcombine.low %v1462, %v1463
  %v1568 = vcombine.low %v1464, %v1465
  %v1569 = vcombine.low %v1466, %v1467
  %v1570 = vcombine.low %v1468, %v1469
  %v1571 = vcombine.low %v1470, %v1471
  %v1572 = vcombine.low %v1472, %v1473
  %v1573 = vcombine.low %v1474, %v1475
  %v1574 = vcombine.low %v1476, %v1477
  %v1575 = vcombine.low %v1478, %v1479
  %v1608 = vmul.f32 %v809, %v1544
  %v1609 = vmul.f32 %v811, %v1545
  %v1610 = vmul.f32 %v813, %v1546
  %v1611 = vmul.f32 %v815, %v1547
  %v1612 = vmul.f32 %v817, %v1548
  %v1613 = vmul.f32 %v819, %v1549
  %v1614 = vmul.f32 %v821, %v1550
  %v1615 = vmul.f32 %v823, %v1551
  %v1616 = vmul.f32 %v825, %v1552
  %v1617 = vmul.f32 %v827, %v1553
  %v1618 = vmul.f32 %v829, %v1554
  %v1619 = vmul.f32 %v831, %v1555
  %v1620 = vmul.f32 %v833, %v1556
  %v1621 = vmul.f32 %v835, %v1557
  %v1622 = vmul.f32 %v837, %v1558
  %v1623 = vmul.f32 %v839, %v1559
  %v1624 = vmul.f32 %v841, %v1560
  %v1625 = vmul.f32 %v843, %v1561
  %v1626 = vmul.f32 %v845, %v1562
  %v1627 = vmul.f32 %v847, %v1563
  %v1628 = vmul.f32 %v849, %v1564
  %v1629 = vmul.f32 %v851, %v1565
  %v1630 = vmul.f32 %v853, %v1566
  %v1631 = vmul.f32 %v855, %v1567
  %v1632 = vmul.f32 %v857, %v1568
  %v1633 = vmul.f32 %v859, %v1569
  %v1634 = vmul.f32 %v861, %v1570
  %v1635 = vmul.f32 %v863, %v1571
  %v1636 = vmul.f32 %v865, %v1572
  %v1637 = vmul.f32 %v867, %v1573
  %v1638 = vmul.f32 %v869, %v1574
  %v1639 = vmul.f32 %v871, %v1575
  %v1640 = vlaneseq
  %v1641 = vshrl.u32 %v1640, 7
  %v1642 = vlaneseq
  %v1643 = vshrl.u32 %v1642, 7
  %v1644 = vsub.s32 0, %v1643
  %v1645 = vrot.slane %v95, %v1644
  %v1646 = vlaneseq
  %v1647 = vshrl.u32 %v1646, 7
  %v1648 = vsub.s32 1, %v1647
  %v1649 = vrot.slane %v95, %v1648
  %v1650 = vlaneseq
  %v1651 = vshrl.u32 %v1650, 7
  %v1652 = vsub.s32 2, %v1651
  %v1653 = vrot.slane %v95, %v1652
  %v1654 = vlaneseq
  %v1655 = vshrl.u32 %v1654, 7
  %v1656 = vsub.s32 3, %v1655
  %v1657 = vrot.slane %v95, %v1656
  %v1658 = vlaneseq
  %v1659 = vshrl.u32 %v1658, 7
  %v1660 = vsub.s32 4, %v1659
  %v1661 = vrot.slane %v95, %v1660
  %v1662 = vlaneseq
  %v1663 = vshrl.u32 %v1662, 7
  %v1664 = vsub.s32 5, %v1663
  %v1665 = vrot.slane %v95, %v1664
  %v1666 = vlaneseq
  %v1667 = vshrl.u32 %v1666, 7
  %v1668 = vsub.s32 6, %v1667
  %v1669 = vrot.slane %v95, %v1668
  %v1670 = vlaneseq
  %v1671 = vshrl.u32 %v1670, 7
  %v1672 = vsub.s32 7, %v1671
  %v1673 = vrot.slane %v95, %v1672
  %v1674 = vlaneseq
  %v1675 = vshrl.u32 %v1674, 7
  %v1676 = vsub.s32 0, %v1675
  %v1677 = vrot.slane %v96, %v1676
  %v1678 = vlaneseq
  %v1679 = vshrl.u32 %v1678, 7
  %v1680 = vsub.s32 1, %v1679
  %v1681 = vrot.slane %v96, %v1680
  %v1682 = vlaneseq
  %v1683 = vshrl.u32 %v1682, 7
  %v1684 = vsub.s32 2, %v1683
  %v1685 = vrot.slane %v96, %v1684
  %v1686 = vlaneseq
  %v1687 = vshrl.u32 %v1686, 7
  %v1688 = vsub.s32 3, %v1687
  %v1689 = vrot.slane %v96, %v1688
  %v1690 = vlaneseq
  %v1691 = vshrl.u32 %v1690, 7
  %v1692 = vsub.s32 4, %v1691
  %v1693 = vrot.slane %v96, %v1692
  %v1694 = vlaneseq
  %v1695 = vshrl.u32 %v1694, 7
  %v1696 = vsub.s32 5, %v1695
  %v1697 = vrot.slane %v96, %v1696
  %v1698 = vlaneseq
  %v1699 = vshrl.u32 %v1698, 7
  %v1700 = vsub.s32 6, %v1699
  %v1701 = vrot.slane %v96, %v1700
  %v1702 = vlaneseq
  %v1703 = vshrl.u32 %v1702, 7
  %v1704 = vsub.s32 7, %v1703
  %v1705 = vrot.slane %v96, %v1704
  %v1706 = vlaneseq
  %v1707 = vshrl.u32 %v1706, 7
  %v1708 = vsub.s32 0, %v1707
  %v1709 = vrot.slane %v97, %v1708
  %v1710 = vlaneseq
  %v1711 = vshrl.u32 %v1710, 7
  %v1712 = vsub.s32 1, %v1711
  %v1713 = vrot.slane %v97, %v1712
  %v1714 = vlaneseq
  %v1715 = vshrl.u32 %v1714, 7
  %v1716 = vsub.s32 2, %v1715
  %v1717 = vrot.slane %v97, %v1716
  %v1718 = vlaneseq
  %v1719 = vshrl.u32 %v1718, 7
  %v1720 = vsub.s32 3, %v1719
  %v1721 = vrot.slane %v97, %v1720
  %v1722 = vlaneseq
  %v1723 = vshrl.u32 %v1722, 7
  %v1724 = vsub.s32 4, %v1723
  %v1725 = vrot.slane %v97, %v1724
  %v1726 = vlaneseq
  %v1727 = vshrl.u32 %v1726, 7
  %v1728 = vsub.s32 5, %v1727
  %v1729 = vrot.slane %v97, %v1728
  %v1730 = vlaneseq
  %v1731 = vshrl.u32 %v1730, 7
  %v1732 = vsub.s32 6, %v1731
  %v1733 = vrot.slane %v97, %v1732
  %v1734 = vlaneseq
  %v1735 = vshrl.u32 %v1734, 7
  %v1736 = vsub.s32 7, %v1735
  %v1737 = vrot.slane %v97, %v1736
  %v1738 = vlaneseq
  %v1739 = vshrl.u32 %v1738, 7
  %v1740 = vsub.s32 0, %v1739
  %v1741 = vrot.slane %v98, %v1740
  %v1742 = vlaneseq
  %v1743 = vshrl.u32 %v1742, 7
  %v1744 = vsub.s32 1, %v1743
  %v1745 = vrot.slane %v98, %v1744
  %v1746 = vlaneseq
  %v1747 = vshrl.u32 %v1746, 7
  %v1748 = vsub.s32 2, %v1747
  %v1749 = vrot.slane %v98, %v1748
  %v1750 = vlaneseq
  %v1751 = vshrl.u32 %v1750, 7
  %v1752 = vsub.s32 3, %v1751
  %v1753 = vrot.slane %v98, %v1752
  %v1754 = vlaneseq
  %v1755 = vshrl.u32 %v1754, 7
  %v1756 = vsub.s32 4, %v1755
  %v1757 = vrot.slane %v98, %v1756
  %v1758 = vlaneseq
  %v1759 = vshrl.u32 %v1758, 7
  %v1760 = vsub.s32 5, %v1759
  %v1761 = vrot.slane %v98, %v1760
  %v1762 = vlaneseq
  %v1763 = vshrl.u32 %v1762, 7
  %v1764 = vsub.s32 6, %v1763
  %v1765 = vrot.slane %v98, %v1764
  %v1766 = vlaneseq
  %v1767 = vshrl.u32 %v1766, 7
  %v1768 = vsub.s32 7, %v1767
  %v1769 = vrot.slane %v98, %v1768
  %v1770 = vlaneseq
  %v1771 = vshrl.u32 %v1770, 7
  %v1772 = vsub.s32 0, %v1771
  %v1773 = vrot.slane %v99, %v1772
  %v1774 = vlaneseq
  %v1775 = vshrl.u32 %v1774, 7
  %v1776 = vsub.s32 1, %v1775
  %v1777 = vrot.slane %v99, %v1776
  %v1778 = vlaneseq
  %v1779 = vshrl.u32 %v1778, 7
  %v1780 = vsub.s32 2, %v1779
  %v1781 = vrot.slane %v99, %v1780
  %v1782 = vlaneseq
  %v1783 = vshrl.u32 %v1782, 7
  %v1784 = vsub.s32 3, %v1783
  %v1785 = vrot.slane %v99, %v1784
  %v1786 = vlaneseq
  %v1787 = vshrl.u32 %v1786, 7
  %v1788 = vsub.s32 4, %v1787
  %v1789 = vrot.slane %v99, %v1788
  %v1790 = vlaneseq
  %v1791 = vshrl.u32 %v1790, 7
  %v1792 = vsub.s32 5, %v1791
  %v1793 = vrot.slane %v99, %v1792
  %v1794 = vlaneseq
  %v1795 = vshrl.u32 %v1794, 7
  %v1796 = vsub.s32 6, %v1795
  %v1797 = vrot.slane %v99, %v1796
  %v1798 = vlaneseq
  %v1799 = vshrl.u32 %v1798, 7
  %v1800 = vsub.s32 7, %v1799
  %v1801 = vrot.slane %v99, %v1800
  %v1802 = vlaneseq
  %v1803 = vshrl.u32 %v1802, 7
  %v1804 = vsub.s32 0, %v1803
  %v1805 = vrot.slane %v100, %v1804
  %v1806 = vlaneseq
  %v1807 = vshrl.u32 %v1806, 7
  %v1808 = vsub.s32 1, %v1807
  %v1809 = vrot.slane %v100, %v1808
  %v1810 = vlaneseq
  %v1811 = vshrl.u32 %v1810, 7
  %v1812 = vsub.s32 2, %v1811
  %v1813 = vrot.slane %v100, %v1812
  %v1814 = vlaneseq
  %v1815 = vshrl.u32 %v1814, 7
  %v1816 = vsub.s32 3, %v1815
  %v1817 = vrot.slane %v100, %v1816
  %v1818 = vlaneseq
  %v1819 = vshrl.u32 %v1818, 7
  %v1820 = vsub.s32 4, %v1819
  %v1821 = vrot.slane %v100, %v1820
  %v1822 = vlaneseq
  %v1823 = vshrl.u32 %v1822, 7
  %v1824 = vsub.s32 5, %v1823
  %v1825 = vrot.slane %v100, %v1824
  %v1826 = vlaneseq
  %v1827 = vshrl.u32 %v1826, 7
  %v1828 = vsub.s32 6, %v1827
  %v1829 = vrot.slane %v100, %v1828
  %v1830 = vlaneseq
  %v1831 = vshrl.u32 %v1830, 7
  %v1832 = vsub.s32 7, %v1831
  %v1833 = vrot.slane %v100, %v1832
  %v1834 = vlaneseq
  %v1835 = vshrl.u32 %v1834, 7
  %v1836 = vsub.s32 0, %v1835
  %v1837 = vrot.slane %v101, %v1836
  %v1838 = vlaneseq
  %v1839 = vshrl.u32 %v1838, 7
  %v1840 = vsub.s32 1, %v1839
  %v1841 = vrot.slane %v101, %v1840
  %v1842 = vlaneseq
  %v1843 = vshrl.u32 %v1842, 7
  %v1844 = vsub.s32 2, %v1843
  %v1845 = vrot.slane %v101, %v1844
  %v1846 = vlaneseq
  %v1847 = vshrl.u32 %v1846, 7
  %v1848 = vsub.s32 3, %v1847
  %v1849 = vrot.slane %v101, %v1848
  %v1850 = vlaneseq
  %v1851 = vshrl.u32 %v1850, 7
  %v1852 = vsub.s32 4, %v1851
  %v1853 = vrot.slane %v101, %v1852
  %v1854 = vlaneseq
  %v1855 = vshrl.u32 %v1854, 7
  %v1856 = vsub.s32 5, %v1855
  %v1857 = vrot.slane %v101, %v1856
  %v1858 = vlaneseq
  %v1859 = vshrl.u32 %v1858, 7
  %v1860 = vsub.s32 6, %v1859
  %v1861 = vrot.slane %v101, %v1860
  %v1862 = vlaneseq
  %v1863 = vshrl.u32 %v1862, 7
  %v1864 = vsub.s32 7, %v1863
  %v1865 = vrot.slane %v101, %v1864
  %v1866 = vlaneseq
  %v1867 = vshrl.u32 %v1866, 7
  %v1868 = vsub.s32 0, %v1867
  %v1869 = vrot.slane %v102, %v1868
  %v1870 = vlaneseq
  %v1871 = vshrl.u32 %v1870, 7
  %v1872 = vsub.s32 1, %v1871
  %v1873 = vrot.slane %v102, %v1872
  %v1874 = vlaneseq
  %v1875 = vshrl.u32 %v1874, 7
  %v1876 = vsub.s32 2, %v1875
  %v1877 = vrot.slane %v102, %v1876
  %v1878 = vlaneseq
  %v1879 = vshrl.u32 %v1878, 7
  %v1880 = vsub.s32 3, %v1879
  %v1881 = vrot.slane %v102, %v1880
  %v1882 = vlaneseq
  %v1883 = vshrl.u32 %v1882, 7
  %v1884 = vsub.s32 4, %v1883
  %v1885 = vrot.slane %v102, %v1884
  %v1886 = vlaneseq
  %v1887 = vshrl.u32 %v1886, 7
  %v1888 = vsub.s32 5, %v1887
  %v1889 = vrot.slane %v102, %v1888
  %v1890 = vlaneseq
  %v1891 = vshrl.u32 %v1890, 7
  %v1892 = vsub.s32 6, %v1891
  %v1893 = vrot.slane %v102, %v1892
  %v1894 = vlaneseq
  %v1895 = vshrl.u32 %v1894, 7
  %v1896 = vsub.s32 7, %v1895
  %v1897 = vrot.slane %v102, %v1896
  %vm1898 = vcmp.eq.s32.totalorder %v1645, %v1641
  %vm1899 = vcmp.eq.s32.totalorder %v1649, %v1641
  %vm1900 = vcmp.eq.s32.totalorder %v1653, %v1641
  %vm1901 = vcmp.eq.s32.totalorder %v1657, %v1641
  %vm1902 = vcmp.eq.s32.totalorder %v1661, %v1641
  %vm1903 = vcmp.eq.s32.totalorder %v1665, %v1641
  %vm1904 = vcmp.eq.s32.totalorder %v1669, %v1641
  %vm1905 = vcmp.eq.s32.totalorder %v1673, %v1641
  %vm1906 = vcmp.eq.s32.totalorder %v1677, %v1641
  %vm1907 = vcmp.eq.s32.totalorder %v1681, %v1641
  %vm1908 = vcmp.eq.s32.totalorder %v1685, %v1641
  %vm1909 = vcmp.eq.s32.totalorder %v1689, %v1641
  %vm1910 = vcmp.eq.s32.totalorder %v1693, %v1641
  %vm1911 = vcmp.eq.s32.totalorder %v1697, %v1641
  %vm1912 = vcmp.eq.s32.totalorder %v1701, %v1641
  %vm1913 = vcmp.eq.s32.totalorder %v1705, %v1641
  %vm1914 = vcmp.eq.s32.totalorder %v1709, %v1641
  %vm1915 = vcmp.eq.s32.totalorder %v1713, %v1641
  %vm1916 = vcmp.eq.s32.totalorder %v1717, %v1641
  %vm1917 = vcmp.eq.s32.totalorder %v1721, %v1641
  %vm1918 = vcmp.eq.s32.totalorder %v1725, %v1641
  %vm1919 = vcmp.eq.s32.totalorder %v1729, %v1641
  %vm1920 = vcmp.eq.s32.totalorder %v1733, %v1641
  %vm1921 = vcmp.eq.s32.totalorder %v1737, %v1641
  %vm1922 = vcmp.eq.s32.totalorder %v1741, %v1641
  %vm1923 = vcmp.eq.s32.totalorder %v1745, %v1641
  %vm1924 = vcmp.eq.s32.totalorder %v1749, %v1641
  %vm1925 = vcmp.eq.s32.totalorder %v1753, %v1641
  %vm1926 = vcmp.eq.s32.totalorder %v1757, %v1641
  %vm1927 = vcmp.eq.s32.totalorder %v1761, %v1641
  %vm1928 = vcmp.eq.s32.totalorder %v1765, %v1641
  %vm1929 = vcmp.eq.s32.totalorder %v1769, %v1641
  %vm1930 = vcmp.eq.s32.totalorder %v1773, %v1641
  %vm1931 = vcmp.eq.s32.totalorder %v1777, %v1641
  %vm1932 = vcmp.eq.s32.totalorder %v1781, %v1641
  %vm1933 = vcmp.eq.s32.totalorder %v1785, %v1641
  %vm1934 = vcmp.eq.s32.totalorder %v1789, %v1641
  %vm1935 = vcmp.eq.s32.totalorder %v1793, %v1641
  %vm1936 = vcmp.eq.s32.totalorder %v1797, %v1641
  %vm1937 = vcmp.eq.s32.totalorder %v1801, %v1641
  %vm1938 = vcmp.eq.s32.totalorder %v1805, %v1641
  %vm1939 = vcmp.eq.s32.totalorder %v1809, %v1641
  %vm1940 = vcmp.eq.s32.totalorder %v1813, %v1641
  %vm1941 = vcmp.eq.s32.totalorder %v1817, %v1641
  %vm1942 = vcmp.eq.s32.totalorder %v1821, %v1641
  %vm1943 = vcmp.eq.s32.totalorder %v1825, %v1641
  %vm1944 = vcmp.eq.s32.totalorder %v1829, %v1641
  %vm1945 = vcmp.eq.s32.totalorder %v1833, %v1641
  %vm1946 = vcmp.eq.s32.totalorder %v1837, %v1641
  %vm1947 = vcmp.eq.s32.totalorder %v1841, %v1641
  %vm1948 = vcmp.eq.s32.totalorder %v1845, %v1641
  %vm1949 = vcmp.eq.s32.totalorder %v1849, %v1641
  %vm1950 = vcmp.eq.s32.totalorder %v1853, %v1641
  %vm1951 = vcmp.eq.s32.totalorder %v1857, %v1641
  %vm1952 = vcmp.eq.s32.totalorder %v1861, %v1641
  %vm1953 = vcmp.eq.s32.totalorder %v1865, %v1641
  %vm1954 = vcmp.eq.s32.totalorder %v1869, %v1641
  %vm1955 = vcmp.eq.s32.totalorder %v1873, %v1641
  %vm1956 = vcmp.eq.s32.totalorder %v1877, %v1641
  %vm1957 = vcmp.eq.s32.totalorder %v1881, %v1641
  %vm1958 = vcmp.eq.s32.totalorder %v1885, %v1641
  %vm1959 = vcmp.eq.s32.totalorder %v1889, %v1641
  %vm1960 = vcmp.eq.s32.totalorder %v1893, %v1641
  %vm1961 = vcmp.eq.s32.totalorder %v1897, %v1641
  %v1962 = vsel %vm1898, 1, 0
  %v1963 = vsel %vm1899, 1, 0
  %v1964 = vsel %vm1900, 1, 0
  %v1965 = vsel %vm1901, 1, 0
  %v1966 = vsel %vm1902, 1, 0
  %v1967 = vsel %vm1903, 1, 0
  %v1968 = vsel %vm1904, 1, 0
  %v1969 = vsel %vm1905, 1, 0
  %v1970 = vsel %vm1906, 1, 0
  %v1971 = vsel %vm1907, 1, 0
  %v1972 = vsel %vm1908, 1, 0
  %v1973 = vsel %vm1909, 1, 0
  %v1974 = vsel %vm1910, 1, 0
  %v1975 = vsel %vm1911, 1, 0
  %v1976 = vsel %vm1912, 1, 0
  %v1977 = vsel %vm1913, 1, 0
  %v1978 = vsel %vm1914, 1, 0
  %v1979 = vsel %vm1915, 1, 0
  %v1980 = vsel %vm1916, 1, 0
  %v1981 = vsel %vm1917, 1, 0
  %v1982 = vsel %vm1918, 1, 0
  %v1983 = vsel %vm1919, 1, 0
  %v1984 = vsel %vm1920, 1, 0
  %v1985 = vsel %vm1921, 1, 0
  %v1986 = vsel %vm1922, 1, 0
  %v1987 = vsel %vm1923, 1, 0
  %v1988 = vsel %vm1924, 1, 0
  %v1989 = vsel %vm1925, 1, 0
  %v1990 = vsel %vm1926, 1, 0
  %v1991 = vsel %vm1927, 1, 0
  %v1992 = vsel %vm1928, 1, 0
  %v1993 = vsel %vm1929, 1, 0
  %v1994 = vsel %vm1930, 1, 0
  %v1995 = vsel %vm1931, 1, 0
  %v1996 = vsel %vm1932, 1, 0
  %v1997 = vsel %vm1933, 1, 0
  %v1998 = vsel %vm1934, 1, 0
  %v1999 = vsel %vm1935, 1, 0
  %v2000 = vsel %vm1936, 1, 0
  %v2001 = vsel %vm1937, 1, 0
  %v2002 = vsel %vm1938, 1, 0
  %v2003 = vsel %vm1939, 1, 0
  %v2004 = vsel %vm1940, 1, 0
  %v2005 = vsel %vm1941, 1, 0
  %v2006 = vsel %vm1942, 1, 0
  %v2007 = vsel %vm1943, 1, 0
  %v2008 = vsel %vm1944, 1, 0
  %v2009 = vsel %vm1945, 1, 0
  %v2010 = vsel %vm1946, 1, 0
  %v2011 = vsel %vm1947, 1, 0
  %v2012 = vsel %vm1948, 1, 0
  %v2013 = vsel %vm1949, 1, 0
  %v2014 = vsel %vm1950, 1, 0
  %v2015 = vsel %vm1951, 1, 0
  %v2016 = vsel %vm1952, 1, 0
  %v2017 = vsel %vm1953, 1, 0
  %v2018 = vsel %vm1954, 1, 0
  %v2019 = vsel %vm1955, 1, 0
  %v2020 = vsel %vm1956, 1, 0
  %v2021 = vsel %vm1957, 1, 0
  %v2022 = vsel %vm1958, 1, 0
  %v2023 = vsel %vm1959, 1, 0
  %v2024 = vsel %vm1960, 1, 0
  %v2025 = vsel %vm1961, 1, 0
  %v2026 = vcvt.s32.f32 %v1962
  %v2027 = vcvt.s32.f32 %v1963
  %v2028 = vcvt.s32.f32 %v1964
  %v2029 = vcvt.s32.f32 %v1965
  %v2030 = vcvt.s32.f32 %v1966
  %v2031 = vcvt.s32.f32 %v1967
  %v2032 = vcvt.s32.f32 %v1968
  %v2033 = vcvt.s32.f32 %v1969
  %v2034 = vcvt.s32.f32 %v1970
  %v2035 = vcvt.s32.f32 %v1971
  %v2036 = vcvt.s32.f32 %v1972
  %v2037 = vcvt.s32.f32 %v1973
  %v2038 = vcvt.s32.f32 %v1974
  %v2039 = vcvt.s32.f32 %v1975
  %v2040 = vcvt.s32.f32 %v1976
  %v2041 = vcvt.s32.f32 %v1977
  %v2042 = vcvt.s32.f32 %v1978
  %v2043 = vcvt.s32.f32 %v1979
  %v2044 = vcvt.s32.f32 %v1980
  %v2045 = vcvt.s32.f32 %v1981
  %v2046 = vcvt.s32.f32 %v1982
  %v2047 = vcvt.s32.f32 %v1983
  %v2048 = vcvt.s32.f32 %v1984
  %v2049 = vcvt.s32.f32 %v1985
  %v2050 = vcvt.s32.f32 %v1986
  %v2051 = vcvt.s32.f32 %v1987
  %v2052 = vcvt.s32.f32 %v1988
  %v2053 = vcvt.s32.f32 %v1989
  %v2054 = vcvt.s32.f32 %v1990
  %v2055 = vcvt.s32.f32 %v1991
  %v2056 = vcvt.s32.f32 %v1992
  %v2057 = vcvt.s32.f32 %v1993
  %v2058 = vcvt.s32.f32 %v1994
  %v2059 = vcvt.s32.f32 %v1995
  %v2060 = vcvt.s32.f32 %v1996
  %v2061 = vcvt.s32.f32 %v1997
  %v2062 = vcvt.s32.f32 %v1998
  %v2063 = vcvt.s32.f32 %v1999
  %v2064 = vcvt.s32.f32 %v2000
  %v2065 = vcvt.s32.f32 %v2001
  %v2066 = vcvt.s32.f32 %v2002
  %v2067 = vcvt.s32.f32 %v2003
  %v2068 = vcvt.s32.f32 %v2004
  %v2069 = vcvt.s32.f32 %v2005
  %v2070 = vcvt.s32.f32 %v2006
  %v2071 = vcvt.s32.f32 %v2007
  %v2072 = vcvt.s32.f32 %v2008
  %v2073 = vcvt.s32.f32 %v2009
  %v2074 = vcvt.s32.f32 %v2010
  %v2075 = vcvt.s32.f32 %v2011
  %v2076 = vcvt.s32.f32 %v2012
  %v2077 = vcvt.s32.f32 %v2013
  %v2078 = vcvt.s32.f32 %v2014
  %v2079 = vcvt.s32.f32 %v2015
  %v2080 = vcvt.s32.f32 %v2016
  %v2081 = vcvt.s32.f32 %v2017
  %v2082 = vcvt.s32.f32 %v2018
  %v2083 = vcvt.s32.f32 %v2019
  %v2084 = vcvt.s32.f32 %v2020
  %v2085 = vcvt.s32.f32 %v2021
  %v2086 = vcvt.s32.f32 %v2022
  %v2087 = vcvt.s32.f32 %v2023
  %v2088 = vcvt.s32.f32 %v2024
  %v2089 = vcvt.s32.f32 %v2025
  %vm2090 = vcmp.ge.s32.totalorder %v95, 0
  %vm2091 = vcmp.ge.s32.totalorder %v96, 0
  %vm2092 = vcmp.ge.s32.totalorder %v97, 0
  %vm2093 = vcmp.ge.s32.totalorder %v98, 0
  %vm2094 = vcmp.ge.s32.totalorder %v99, 0
  %vm2095 = vcmp.ge.s32.totalorder %v100, 0
  %vm2096 = vcmp.ge.s32.totalorder %v101, 0
  %vm2097 = vcmp.ge.s32.totalorder %v102, 0
  %v2098 = vsel %vm2090, 1, 0
  %v2099 = vsel %vm2091, 1, 0
  %v2100 = vsel %vm2092, 1, 0
  %v2101 = vsel %vm2093, 1, 0
  %v2102 = vsel %vm2094, 1, 0
  %v2103 = vsel %vm2095, 1, 0
  %v2104 = vsel %vm2096, 1, 0
  %v2105 = vsel %vm2097, 1, 0
  %v2106 = vcvt.s32.f32 %v2098
  %v2107 = vcvt.s32.f32 %v2099
  %v2108 = vcvt.s32.f32 %v2100
  %v2109 = vcvt.s32.f32 %v2101
  %v2110 = vcvt.s32.f32 %v2102
  %v2111 = vcvt.s32.f32 %v2103
  %v2112 = vcvt.s32.f32 %v2104
  %v2113 = vcvt.s32.f32 %v2105
  %v2114 = vld [vmem:[%s2] sm:$0x3]
  %v2179 = vcombine.low %v2026, %v2027
  %v2180 = vcombine.low %v2028, %v2029
  %v2181 = vcombine.low %v2030, %v2031
  %v2182 = vcombine.low %v2032, %v2033
  %v2183 = vcombine.low %v2034, %v2035
  %v2184 = vcombine.low %v2036, %v2037
  %v2185 = vcombine.low %v2038, %v2039
  %v2186 = vcombine.low %v2040, %v2041
  %v2187 = vcombine.low %v2042, %v2043
  %v2188 = vcombine.low %v2044, %v2045
  %v2189 = vcombine.low %v2046, %v2047
  %v2190 = vcombine.low %v2048, %v2049
  %v2191 = vcombine.low %v2050, %v2051
  %v2192 = vcombine.low %v2052, %v2053
  %v2193 = vcombine.low %v2054, %v2055
  %v2194 = vcombine.low %v2056, %v2057
  %v2195 = vcombine.low %v2058, %v2059
  %v2196 = vcombine.low %v2060, %v2061
  %v2197 = vcombine.low %v2062, %v2063
  %v2198 = vcombine.low %v2064, %v2065
  %v2199 = vcombine.low %v2066, %v2067
  %v2200 = vcombine.low %v2068, %v2069
  %v2201 = vcombine.low %v2070, %v2071
  %v2202 = vcombine.low %v2072, %v2073
  %v2203 = vcombine.low %v2074, %v2075
  %v2204 = vcombine.low %v2076, %v2077
  %v2205 = vcombine.low %v2078, %v2079
  %v2206 = vcombine.low %v2080, %v2081
  %v2207 = vcombine.low %v2082, %v2083
  %v2208 = vcombine.low %v2084, %v2085
  %v2209 = vcombine.low %v2086, %v2087
  %v2210 = vcombine.low %v2088, %v2089
  %v2243 = vmul.f32 %v1608, %v2179
  %v2244 = vmul.f32 %v1609, %v2180
  %v2245 = vmul.f32 %v1610, %v2181
  %v2246 = vmul.f32 %v1611, %v2182
  %v2247 = vmul.f32 %v1612, %v2183
  %v2248 = vmul.f32 %v1613, %v2184
  %v2249 = vmul.f32 %v1614, %v2185
  %v2250 = vmul.f32 %v1615, %v2186
  %v2251 = vmul.f32 %v1616, %v2187
  %v2252 = vmul.f32 %v1617, %v2188
  %v2253 = vmul.f32 %v1618, %v2189
  %v2254 = vmul.f32 %v1619, %v2190
  %v2255 = vmul.f32 %v1620, %v2191
  %v2256 = vmul.f32 %v1621, %v2192
  %v2257 = vmul.f32 %v1622, %v2193
  %v2258 = vmul.f32 %v1623, %v2194
  %v2259 = vmul.f32 %v1624, %v2195
  %v2260 = vmul.f32 %v1625, %v2196
  %v2261 = vmul.f32 %v1626, %v2197
  %v2262 = vmul.f32 %v1627, %v2198
  %v2263 = vmul.f32 %v1628, %v2199
  %v2264 = vmul.f32 %v1629, %v2200
  %v2265 = vmul.f32 %v1630, %v2201
  %v2266 = vmul.f32 %v1631, %v2202
  %v2267 = vmul.f32 %v1632, %v2203
  %v2268 = vmul.f32 %v1633, %v2204
  %v2269 = vmul.f32 %v1634, %v2205
  %v2270 = vmul.f32 %v1635, %v2206
  %v2271 = vmul.f32 %v1636, %v2207
  %v2272 = vmul.f32 %v1637, %v2208
  %v2273 = vmul.f32 %v1638, %v2209
  %v2274 = vmul.f32 %v1639, %v2210
  %v2307 = vcombine.high %v2243, %v2243
  %v2308 = vcombine.high %v2244, %v2244
  %v2309 = vcombine.high %v2245, %v2245
  %v2310 = vcombine.high %v2246, %v2246
  %v2311 = vcombine.high %v2247, %v2247
  %v2312 = vcombine.high %v2248, %v2248
  %v2313 = vcombine.high %v2249, %v2249
  %v2314 = vcombine.high %v2250, %v2250
  %v2315 = vcombine.high %v2251, %v2251
  %v2316 = vcombine.high %v2252, %v2252
  %v2317 = vcombine.high %v2253, %v2253
  %v2318 = vcombine.high %v2254, %v2254
  %v2319 = vcombine.high %v2255, %v2255
  %v2320 = vcombine.high %v2256, %v2256
  %v2321 = vcombine.high %v2257, %v2257
  %v2322 = vcombine.high %v2258, %v2258
  %v2323 = vcombine.high %v2259, %v2259
  %v2324 = vcombine.high %v2260, %v2260
  %v2325 = vcombine.high %v2261, %v2261
  %v2326 = vcombine.high %v2262, %v2262
  %v2327 = vcombine.high %v2263, %v2263
  %v2328 = vcombine.high %v2264, %v2264
  %v2329 = vcombine.high %v2265, %v2265
  %v2330 = vcombine.high %v2266, %v2266
  %v2331 = vcombine.high %v2267, %v2267
  %v2332 = vcombine.high %v2268, %v2268
  %v2333 = vcombine.high %v2269, %v2269
  %v2334 = vcombine.high %v2270, %v2270
  %v2335 = vcombine.high %v2271, %v2271
  %v2336 = vcombine.high %v2272, %v2272
  %v2337 = vcombine.high %v2273, %v2273
  %v2338 = vcombine.high %v2274, %v2274
  %v2371 = vsel %vm199, %v2243, 0.0
  %v2372 = vsel %vm199, %v2307, 0.0
  %v2373 = vadd.f32 %v2371, %v2372
  %v2374 = vsel %vm199, %v2244, 0.0
  %v2375 = vadd.f32 %v2373, %v2374
  %v2376 = vsel %vm199, %v2308, 0.0
  %v2377 = vadd.f32 %v2375, %v2376
  %v2378 = vsel %vm199, %v2245, 0.0
  %v2379 = vadd.f32 %v2377, %v2378
  %v2380 = vsel %vm199, %v2309, 0.0
  %v2381 = vadd.f32 %v2379, %v2380
  %v2382 = vsel %vm199, %v2246, 0.0
  %v2383 = vadd.f32 %v2381, %v2382
  %v2384 = vsel %vm199, %v2310, 0.0
  %v2385 = vadd.f32 %v2383, %v2384
  %v2386 = vsel %vm199, %v2247, 0.0
  %v2387 = vadd.f32 %v2385, %v2386
  %v2388 = vsel %vm199, %v2311, 0.0
  %v2389 = vadd.f32 %v2387, %v2388
  %v2390 = vsel %vm199, %v2248, 0.0
  %v2391 = vadd.f32 %v2389, %v2390
  %v2392 = vsel %vm199, %v2312, 0.0
  %v2393 = vadd.f32 %v2391, %v2392
  %v2394 = vsel %vm199, %v2249, 0.0
  %v2395 = vadd.f32 %v2393, %v2394
  %v2396 = vsel %vm199, %v2313, 0.0
  %v2397 = vadd.f32 %v2395, %v2396
  %v2398 = vsel %vm199, %v2250, 0.0
  %v2399 = vadd.f32 %v2397, %v2398
  %v2400 = vsel %vm199, %v2314, 0.0
  %v2401 = vadd.f32 %v2399, %v2400
  %v2402 = vsel %vm199, %v2251, 0.0
  %v2403 = vadd.f32 %v2401, %v2402
  %v2404 = vsel %vm199, %v2315, 0.0
  %v2405 = vadd.f32 %v2403, %v2404
  %v2406 = vsel %vm199, %v2252, 0.0
  %v2407 = vadd.f32 %v2405, %v2406
  %v2408 = vsel %vm199, %v2316, 0.0
  %v2409 = vadd.f32 %v2407, %v2408
  %v2410 = vsel %vm199, %v2253, 0.0
  %v2411 = vadd.f32 %v2409, %v2410
  %v2412 = vsel %vm199, %v2317, 0.0
  %v2413 = vadd.f32 %v2411, %v2412
  %v2414 = vsel %vm199, %v2254, 0.0
  %v2415 = vadd.f32 %v2413, %v2414
  %v2416 = vsel %vm199, %v2318, 0.0
  %v2417 = vadd.f32 %v2415, %v2416
  %v2418 = vsel %vm199, %v2255, 0.0
  %v2419 = vadd.f32 %v2417, %v2418
  %v2420 = vsel %vm199, %v2319, 0.0
  %v2421 = vadd.f32 %v2419, %v2420
  %v2422 = vsel %vm199, %v2256, 0.0
  %v2423 = vadd.f32 %v2421, %v2422
  %v2424 = vsel %vm199, %v2320, 0.0
  %v2425 = vadd.f32 %v2423, %v2424
  %v2426 = vsel %vm199, %v2257, 0.0
  %v2427 = vadd.f32 %v2425, %v2426
  %v2428 = vsel %vm199, %v2321, 0.0
  %v2429 = vadd.f32 %v2427, %v2428
  %v2430 = vsel %vm199, %v2258, 0.0
  %v2431 = vadd.f32 %v2429, %v2430
  %v2432 = vsel %vm199, %v2322, 0.0
  %v2433 = vadd.f32 %v2431, %v2432
  %2434 = vadd.xlane.f32.xlu0 %v2433
  %v2435 = vpop.xlane.xlu0 %2434
  %v2436 = vsel %vm199, %v2259, 0.0
  %v2437 = vsel %vm199, %v2323, 0.0
  %v2438 = vadd.f32 %v2436, %v2437
  %v2439 = vsel %vm199, %v2260, 0.0
  %v2440 = vadd.f32 %v2438, %v2439
  %v2441 = vsel %vm199, %v2324, 0.0
  %v2442 = vadd.f32 %v2440, %v2441
  %v2443 = vsel %vm199, %v2261, 0.0
  %v2444 = vadd.f32 %v2442, %v2443
  %v2445 = vsel %vm199, %v2325, 0.0
  %v2446 = vadd.f32 %v2444, %v2445
  %v2447 = vsel %vm199, %v2262, 0.0
  %v2448 = vadd.f32 %v2446, %v2447
  %v2449 = vsel %vm199, %v2326, 0.0
  %v2450 = vadd.f32 %v2448, %v2449
  %v2451 = vsel %vm199, %v2263, 0.0
  %v2452 = vadd.f32 %v2450, %v2451
  %v2453 = vsel %vm199, %v2327, 0.0
  %v2454 = vadd.f32 %v2452, %v2453
  %v2455 = vsel %vm199, %v2264, 0.0
  %v2456 = vadd.f32 %v2454, %v2455
  %v2457 = vsel %vm199, %v2328, 0.0
  %v2458 = vadd.f32 %v2456, %v2457
  %v2459 = vsel %vm199, %v2265, 0.0
  %v2460 = vadd.f32 %v2458, %v2459
  %v2461 = vsel %vm199, %v2329, 0.0
  %v2462 = vadd.f32 %v2460, %v2461
  %v2463 = vsel %vm199, %v2266, 0.0
  %v2464 = vadd.f32 %v2462, %v2463
  %v2465 = vsel %vm199, %v2330, 0.0
  %v2466 = vadd.f32 %v2464, %v2465
  %v2467 = vsel %vm199, %v2267, 0.0
  %v2468 = vadd.f32 %v2466, %v2467
  %v2469 = vsel %vm199, %v2331, 0.0
  %v2470 = vadd.f32 %v2468, %v2469
  %v2471 = vsel %vm199, %v2268, 0.0
  %v2472 = vadd.f32 %v2470, %v2471
  %v2473 = vsel %vm199, %v2332, 0.0
  %v2474 = vadd.f32 %v2472, %v2473
  %v2475 = vsel %vm199, %v2269, 0.0
  %v2476 = vadd.f32 %v2474, %v2475
  %v2477 = vsel %vm199, %v2333, 0.0
  %v2478 = vadd.f32 %v2476, %v2477
  %v2479 = vsel %vm199, %v2270, 0.0
  %v2480 = vadd.f32 %v2478, %v2479
  %v2481 = vsel %vm199, %v2334, 0.0
  %v2482 = vadd.f32 %v2480, %v2481
  %v2483 = vsel %vm199, %v2271, 0.0
  %v2484 = vadd.f32 %v2482, %v2483
  %v2485 = vsel %vm199, %v2335, 0.0
  %v2486 = vadd.f32 %v2484, %v2485
  %v2487 = vsel %vm199, %v2272, 0.0
  %v2488 = vadd.f32 %v2486, %v2487
  %v2489 = vsel %vm199, %v2336, 0.0
  %v2490 = vadd.f32 %v2488, %v2489
  %v2491 = vsel %vm199, %v2273, 0.0
  %v2492 = vadd.f32 %v2490, %v2491
  %v2493 = vsel %vm199, %v2337, 0.0
  %v2494 = vadd.f32 %v2492, %v2493
  %v2495 = vsel %vm199, %v2274, 0.0
  %v2496 = vadd.f32 %v2494, %v2495
  %v2497 = vsel %vm199, %v2338, 0.0
  %v2498 = vadd.f32 %v2496, %v2497
  %2499 = vadd.xlane.f32.xlu0 %v2498
  %v2500 = vpop.xlane.xlu0 %2499
  %v2503 = vlaneseq
  %v2504 = vand.u32 %v2503, 127
  %v2505 = vlaneseq
  %v2506 = vshrl.u32 %v2505, 7
  %v2507 = vsub.s32 %v2504, %v2506
  %v2508 = vrot.slane %v2435, %v2507
  %v2509 = vlaneseq
  %v2510 = vshrl.u32 %v2509, 7
  %v2511 = vsub.s32 %v2504, %v2510
  %v2512 = vrot.slane %v2500, %v2511
  %vm2513 = vcmask 1041409
  %v2514 = vsel %vm2513, %v2512, %v2508
  %v2516 = vadd.f32 %v2114, %v2514
  %vm2517 = vcmask 25600
  %2518 = vst.msk [vmem:[%s2] sm:$0x3] %vm2517, %v2516
  %v2519 = vld [vmem:[%s3] sm:$0x3]
  %v2528 = vlaneseq
  %v2529 = vshrl.u32 %v2528, 7
  %v2530 = vsub.s32 0, %v2529
  %v2531 = vrot.slane %v2106, %v2530
  %v2532 = vlaneseq
  %v2533 = vshrl.u32 %v2532, 7
  %v2534 = vsub.s32 1, %v2533
  %v2535 = vrot.slane %v2106, %v2534
  %v2536 = vlaneseq
  %v2537 = vshrl.u32 %v2536, 7
  %v2538 = vsub.s32 2, %v2537
  %v2539 = vrot.slane %v2106, %v2538
  %v2540 = vlaneseq
  %v2541 = vshrl.u32 %v2540, 7
  %v2542 = vsub.s32 3, %v2541
  %v2543 = vrot.slane %v2106, %v2542
  %v2544 = vlaneseq
  %v2545 = vshrl.u32 %v2544, 7
  %v2546 = vsub.s32 4, %v2545
  %v2547 = vrot.slane %v2106, %v2546
  %v2548 = vlaneseq
  %v2549 = vshrl.u32 %v2548, 7
  %v2550 = vsub.s32 5, %v2549
  %v2551 = vrot.slane %v2106, %v2550
  %v2552 = vlaneseq
  %v2553 = vshrl.u32 %v2552, 7
  %v2554 = vsub.s32 6, %v2553
  %v2555 = vrot.slane %v2106, %v2554
  %v2556 = vlaneseq
  %v2557 = vshrl.u32 %v2556, 7
  %v2558 = vsub.s32 7, %v2557
  %v2559 = vrot.slane %v2106, %v2558
  %v2560 = vlaneseq
  %v2561 = vshrl.u32 %v2560, 7
  %v2562 = vsub.s32 0, %v2561
  %v2563 = vrot.slane %v2107, %v2562
  %v2564 = vlaneseq
  %v2565 = vshrl.u32 %v2564, 7
  %v2566 = vsub.s32 1, %v2565
  %v2567 = vrot.slane %v2107, %v2566
  %v2568 = vlaneseq
  %v2569 = vshrl.u32 %v2568, 7
  %v2570 = vsub.s32 2, %v2569
  %v2571 = vrot.slane %v2107, %v2570
  %v2572 = vlaneseq
  %v2573 = vshrl.u32 %v2572, 7
  %v2574 = vsub.s32 3, %v2573
  %v2575 = vrot.slane %v2107, %v2574
  %v2576 = vlaneseq
  %v2577 = vshrl.u32 %v2576, 7
  %v2578 = vsub.s32 4, %v2577
  %v2579 = vrot.slane %v2107, %v2578
  %v2580 = vlaneseq
  %v2581 = vshrl.u32 %v2580, 7
  %v2582 = vsub.s32 5, %v2581
  %v2583 = vrot.slane %v2107, %v2582
  %v2584 = vlaneseq
  %v2585 = vshrl.u32 %v2584, 7
  %v2586 = vsub.s32 6, %v2585
  %v2587 = vrot.slane %v2107, %v2586
  %v2588 = vlaneseq
  %v2589 = vshrl.u32 %v2588, 7
  %v2590 = vsub.s32 7, %v2589
  %v2591 = vrot.slane %v2107, %v2590
  %v2592 = vlaneseq
  %v2593 = vshrl.u32 %v2592, 7
  %v2594 = vsub.s32 0, %v2593
  %v2595 = vrot.slane %v2108, %v2594
  %v2596 = vlaneseq
  %v2597 = vshrl.u32 %v2596, 7
  %v2598 = vsub.s32 1, %v2597
  %v2599 = vrot.slane %v2108, %v2598
  %v2600 = vlaneseq
  %v2601 = vshrl.u32 %v2600, 7
  %v2602 = vsub.s32 2, %v2601
  %v2603 = vrot.slane %v2108, %v2602
  %v2604 = vlaneseq
  %v2605 = vshrl.u32 %v2604, 7
  %v2606 = vsub.s32 3, %v2605
  %v2607 = vrot.slane %v2108, %v2606
  %v2608 = vlaneseq
  %v2609 = vshrl.u32 %v2608, 7
  %v2610 = vsub.s32 4, %v2609
  %v2611 = vrot.slane %v2108, %v2610
  %v2612 = vlaneseq
  %v2613 = vshrl.u32 %v2612, 7
  %v2614 = vsub.s32 5, %v2613
  %v2615 = vrot.slane %v2108, %v2614
  %v2616 = vlaneseq
  %v2617 = vshrl.u32 %v2616, 7
  %v2618 = vsub.s32 6, %v2617
  %v2619 = vrot.slane %v2108, %v2618
  %v2620 = vlaneseq
  %v2621 = vshrl.u32 %v2620, 7
  %v2622 = vsub.s32 7, %v2621
  %v2623 = vrot.slane %v2108, %v2622
  %v2624 = vlaneseq
  %v2625 = vshrl.u32 %v2624, 7
  %v2626 = vsub.s32 0, %v2625
  %v2627 = vrot.slane %v2109, %v2626
  %v2628 = vlaneseq
  %v2629 = vshrl.u32 %v2628, 7
  %v2630 = vsub.s32 1, %v2629
  %v2631 = vrot.slane %v2109, %v2630
  %v2632 = vlaneseq
  %v2633 = vshrl.u32 %v2632, 7
  %v2634 = vsub.s32 2, %v2633
  %v2635 = vrot.slane %v2109, %v2634
  %v2636 = vlaneseq
  %v2637 = vshrl.u32 %v2636, 7
  %v2638 = vsub.s32 3, %v2637
  %v2639 = vrot.slane %v2109, %v2638
  %v2640 = vlaneseq
  %v2641 = vshrl.u32 %v2640, 7
  %v2642 = vsub.s32 4, %v2641
  %v2643 = vrot.slane %v2109, %v2642
  %v2644 = vlaneseq
  %v2645 = vshrl.u32 %v2644, 7
  %v2646 = vsub.s32 5, %v2645
  %v2647 = vrot.slane %v2109, %v2646
  %v2648 = vlaneseq
  %v2649 = vshrl.u32 %v2648, 7
  %v2650 = vsub.s32 6, %v2649
  %v2651 = vrot.slane %v2109, %v2650
  %v2652 = vlaneseq
  %v2653 = vshrl.u32 %v2652, 7
  %v2654 = vsub.s32 7, %v2653
  %v2655 = vrot.slane %v2109, %v2654
  %v2656 = vlaneseq
  %v2657 = vshrl.u32 %v2656, 7
  %v2658 = vsub.s32 0, %v2657
  %v2659 = vrot.slane %v2110, %v2658
  %v2660 = vlaneseq
  %v2661 = vshrl.u32 %v2660, 7
  %v2662 = vsub.s32 1, %v2661
  %v2663 = vrot.slane %v2110, %v2662
  %v2664 = vlaneseq
  %v2665 = vshrl.u32 %v2664, 7
  %v2666 = vsub.s32 2, %v2665
  %v2667 = vrot.slane %v2110, %v2666
  %v2668 = vlaneseq
  %v2669 = vshrl.u32 %v2668, 7
  %v2670 = vsub.s32 3, %v2669
  %v2671 = vrot.slane %v2110, %v2670
  %v2672 = vlaneseq
  %v2673 = vshrl.u32 %v2672, 7
  %v2674 = vsub.s32 4, %v2673
  %v2675 = vrot.slane %v2110, %v2674
  %v2676 = vlaneseq
  %v2677 = vshrl.u32 %v2676, 7
  %v2678 = vsub.s32 5, %v2677
  %v2679 = vrot.slane %v2110, %v2678
  %v2680 = vlaneseq
  %v2681 = vshrl.u32 %v2680, 7
  %v2682 = vsub.s32 6, %v2681
  %v2683 = vrot.slane %v2110, %v2682
  %v2684 = vlaneseq
  %v2685 = vshrl.u32 %v2684, 7
  %v2686 = vsub.s32 7, %v2685
  %v2687 = vrot.slane %v2110, %v2686
  %v2688 = vlaneseq
  %v2689 = vshrl.u32 %v2688, 7
  %v2690 = vsub.s32 0, %v2689
  %v2691 = vrot.slane %v2111, %v2690
  %v2692 = vlaneseq
  %v2693 = vshrl.u32 %v2692, 7
  %v2694 = vsub.s32 1, %v2693
  %v2695 = vrot.slane %v2111, %v2694
  %v2696 = vlaneseq
  %v2697 = vshrl.u32 %v2696, 7
  %v2698 = vsub.s32 2, %v2697
  %v2699 = vrot.slane %v2111, %v2698
  %v2700 = vlaneseq
  %v2701 = vshrl.u32 %v2700, 7
  %v2702 = vsub.s32 3, %v2701
  %v2703 = vrot.slane %v2111, %v2702
  %v2704 = vlaneseq
  %v2705 = vshrl.u32 %v2704, 7
  %v2706 = vsub.s32 4, %v2705
  %v2707 = vrot.slane %v2111, %v2706
  %v2708 = vlaneseq
  %v2709 = vshrl.u32 %v2708, 7
  %v2710 = vsub.s32 5, %v2709
  %v2711 = vrot.slane %v2111, %v2710
  %v2712 = vlaneseq
  %v2713 = vshrl.u32 %v2712, 7
  %v2714 = vsub.s32 6, %v2713
  %v2715 = vrot.slane %v2111, %v2714
  %v2716 = vlaneseq
  %v2717 = vshrl.u32 %v2716, 7
  %v2718 = vsub.s32 7, %v2717
  %v2719 = vrot.slane %v2111, %v2718
  %v2720 = vlaneseq
  %v2721 = vshrl.u32 %v2720, 7
  %v2722 = vsub.s32 0, %v2721
  %v2723 = vrot.slane %v2112, %v2722
  %v2724 = vlaneseq
  %v2725 = vshrl.u32 %v2724, 7
  %v2726 = vsub.s32 1, %v2725
  %v2727 = vrot.slane %v2112, %v2726
  %v2728 = vlaneseq
  %v2729 = vshrl.u32 %v2728, 7
  %v2730 = vsub.s32 2, %v2729
  %v2731 = vrot.slane %v2112, %v2730
  %v2732 = vlaneseq
  %v2733 = vshrl.u32 %v2732, 7
  %v2734 = vsub.s32 3, %v2733
  %v2735 = vrot.slane %v2112, %v2734
  %v2736 = vlaneseq
  %v2737 = vshrl.u32 %v2736, 7
  %v2738 = vsub.s32 4, %v2737
  %v2739 = vrot.slane %v2112, %v2738
  %v2740 = vlaneseq
  %v2741 = vshrl.u32 %v2740, 7
  %v2742 = vsub.s32 5, %v2741
  %v2743 = vrot.slane %v2112, %v2742
  %v2744 = vlaneseq
  %v2745 = vshrl.u32 %v2744, 7
  %v2746 = vsub.s32 6, %v2745
  %v2747 = vrot.slane %v2112, %v2746
  %v2748 = vlaneseq
  %v2749 = vshrl.u32 %v2748, 7
  %v2750 = vsub.s32 7, %v2749
  %v2751 = vrot.slane %v2112, %v2750
  %v2752 = vlaneseq
  %v2753 = vshrl.u32 %v2752, 7
  %v2754 = vsub.s32 0, %v2753
  %v2755 = vrot.slane %v2113, %v2754
  %v2756 = vlaneseq
  %v2757 = vshrl.u32 %v2756, 7
  %v2758 = vsub.s32 1, %v2757
  %v2759 = vrot.slane %v2113, %v2758
  %v2760 = vlaneseq
  %v2761 = vshrl.u32 %v2760, 7
  %v2762 = vsub.s32 2, %v2761
  %v2763 = vrot.slane %v2113, %v2762
  %v2764 = vlaneseq
  %v2765 = vshrl.u32 %v2764, 7
  %v2766 = vsub.s32 3, %v2765
  %v2767 = vrot.slane %v2113, %v2766
  %v2768 = vlaneseq
  %v2769 = vshrl.u32 %v2768, 7
  %v2770 = vsub.s32 4, %v2769
  %v2771 = vrot.slane %v2113, %v2770
  %v2772 = vlaneseq
  %v2773 = vshrl.u32 %v2772, 7
  %v2774 = vsub.s32 5, %v2773
  %v2775 = vrot.slane %v2113, %v2774
  %v2776 = vlaneseq
  %v2777 = vshrl.u32 %v2776, 7
  %v2778 = vsub.s32 6, %v2777
  %v2779 = vrot.slane %v2113, %v2778
  %v2780 = vlaneseq
  %v2781 = vshrl.u32 %v2780, 7
  %v2782 = vsub.s32 7, %v2781
  %v2783 = vrot.slane %v2113, %v2782
  %v2784 = vcombine.low %v2531, %v2535
  %v2785 = vcombine.low %v2539, %v2543
  %v2786 = vcombine.low %v2547, %v2551
  %v2787 = vcombine.low %v2555, %v2559
  %v2788 = vcombine.low %v2563, %v2567
  %v2789 = vcombine.low %v2571, %v2575
  %v2790 = vcombine.low %v2579, %v2583
  %v2791 = vcombine.low %v2587, %v2591
  %v2792 = vcombine.low %v2595, %v2599
  %v2793 = vcombine.low %v2603, %v2607
  %v2794 = vcombine.low %v2611, %v2615
  %v2795 = vcombine.low %v2619, %v2623
  %v2796 = vcombine.low %v2627, %v2631
  %v2797 = vcombine.low %v2635, %v2639
  %v2798 = vcombine.low %v2643, %v2647
  %v2799 = vcombine.low %v2651, %v2655
  %v2800 = vcombine.low %v2659, %v2663
  %v2801 = vcombine.low %v2667, %v2671
  %v2802 = vcombine.low %v2675, %v2679
  %v2803 = vcombine.low %v2683, %v2687
  %v2804 = vcombine.low %v2691, %v2695
  %v2805 = vcombine.low %v2699, %v2703
  %v2806 = vcombine.low %v2707, %v2711
  %v2807 = vcombine.low %v2715, %v2719
  %v2808 = vcombine.low %v2723, %v2727
  %v2809 = vcombine.low %v2731, %v2735
  %v2810 = vcombine.low %v2739, %v2743
  %v2811 = vcombine.low %v2747, %v2751
  %v2812 = vcombine.low %v2755, %v2759
  %v2813 = vcombine.low %v2763, %v2767
  %v2814 = vcombine.low %v2771, %v2775
  %v2815 = vcombine.low %v2779, %v2783
  %v2848 = vmul.f32 %v1608, %v2784
  %v2849 = vmul.f32 %v1609, %v2785
  %v2850 = vmul.f32 %v1610, %v2786
  %v2851 = vmul.f32 %v1611, %v2787
  %v2852 = vmul.f32 %v1612, %v2788
  %v2853 = vmul.f32 %v1613, %v2789
  %v2854 = vmul.f32 %v1614, %v2790
  %v2855 = vmul.f32 %v1615, %v2791
  %v2856 = vmul.f32 %v1616, %v2792
  %v2857 = vmul.f32 %v1617, %v2793
  %v2858 = vmul.f32 %v1618, %v2794
  %v2859 = vmul.f32 %v1619, %v2795
  %v2860 = vmul.f32 %v1620, %v2796
  %v2861 = vmul.f32 %v1621, %v2797
  %v2862 = vmul.f32 %v1622, %v2798
  %v2863 = vmul.f32 %v1623, %v2799
  %v2864 = vmul.f32 %v1624, %v2800
  %v2865 = vmul.f32 %v1625, %v2801
  %v2866 = vmul.f32 %v1626, %v2802
  %v2867 = vmul.f32 %v1627, %v2803
  %v2868 = vmul.f32 %v1628, %v2804
  %v2869 = vmul.f32 %v1629, %v2805
  %v2870 = vmul.f32 %v1630, %v2806
  %v2871 = vmul.f32 %v1631, %v2807
  %v2872 = vmul.f32 %v1632, %v2808
  %v2873 = vmul.f32 %v1633, %v2809
  %v2874 = vmul.f32 %v1634, %v2810
  %v2875 = vmul.f32 %v1635, %v2811
  %v2876 = vmul.f32 %v1636, %v2812
  %v2877 = vmul.f32 %v1637, %v2813
  %v2878 = vmul.f32 %v1638, %v2814
  %v2879 = vmul.f32 %v1639, %v2815
  %v2912 = vcombine.high %v2848, %v2848
  %v2913 = vcombine.high %v2849, %v2849
  %v2914 = vcombine.high %v2850, %v2850
  %v2915 = vcombine.high %v2851, %v2851
  %v2916 = vcombine.high %v2852, %v2852
  %v2917 = vcombine.high %v2853, %v2853
  %v2918 = vcombine.high %v2854, %v2854
  %v2919 = vcombine.high %v2855, %v2855
  %v2920 = vcombine.high %v2856, %v2856
  %v2921 = vcombine.high %v2857, %v2857
  %v2922 = vcombine.high %v2858, %v2858
  %v2923 = vcombine.high %v2859, %v2859
  %v2924 = vcombine.high %v2860, %v2860
  %v2925 = vcombine.high %v2861, %v2861
  %v2926 = vcombine.high %v2862, %v2862
  %v2927 = vcombine.high %v2863, %v2863
  %v2928 = vcombine.high %v2864, %v2864
  %v2929 = vcombine.high %v2865, %v2865
  %v2930 = vcombine.high %v2866, %v2866
  %v2931 = vcombine.high %v2867, %v2867
  %v2932 = vcombine.high %v2868, %v2868
  %v2933 = vcombine.high %v2869, %v2869
  %v2934 = vcombine.high %v2870, %v2870
  %v2935 = vcombine.high %v2871, %v2871
  %v2936 = vcombine.high %v2872, %v2872
  %v2937 = vcombine.high %v2873, %v2873
  %v2938 = vcombine.high %v2874, %v2874
  %v2939 = vcombine.high %v2875, %v2875
  %v2940 = vcombine.high %v2876, %v2876
  %v2941 = vcombine.high %v2877, %v2877
  %v2942 = vcombine.high %v2878, %v2878
  %v2943 = vcombine.high %v2879, %v2879
  %v2976 = vsel %vm199, %v2848, 0.0
  %v2977 = vsel %vm199, %v2912, 0.0
  %v2978 = vadd.f32 %v2976, %v2977
  %v2979 = vsel %vm199, %v2849, 0.0
  %v2980 = vadd.f32 %v2978, %v2979
  %v2981 = vsel %vm199, %v2913, 0.0
  %v2982 = vadd.f32 %v2980, %v2981
  %v2983 = vsel %vm199, %v2850, 0.0
  %v2984 = vadd.f32 %v2982, %v2983
  %v2985 = vsel %vm199, %v2914, 0.0
  %v2986 = vadd.f32 %v2984, %v2985
  %v2987 = vsel %vm199, %v2851, 0.0
  %v2988 = vadd.f32 %v2986, %v2987
  %v2989 = vsel %vm199, %v2915, 0.0
  %v2990 = vadd.f32 %v2988, %v2989
  %v2991 = vsel %vm199, %v2852, 0.0
  %v2992 = vadd.f32 %v2990, %v2991
  %v2993 = vsel %vm199, %v2916, 0.0
  %v2994 = vadd.f32 %v2992, %v2993
  %v2995 = vsel %vm199, %v2853, 0.0
  %v2996 = vadd.f32 %v2994, %v2995
  %v2997 = vsel %vm199, %v2917, 0.0
  %v2998 = vadd.f32 %v2996, %v2997
  %v2999 = vsel %vm199, %v2854, 0.0
  %v3000 = vadd.f32 %v2998, %v2999
  %v3001 = vsel %vm199, %v2918, 0.0
  %v3002 = vadd.f32 %v3000, %v3001
  %v3003 = vsel %vm199, %v2855, 0.0
  %v3004 = vadd.f32 %v3002, %v3003
  %v3005 = vsel %vm199, %v2919, 0.0
  %v3006 = vadd.f32 %v3004, %v3005
  %v3007 = vsel %vm199, %v2856, 0.0
  %v3008 = vadd.f32 %v3006, %v3007
  %v3009 = vsel %vm199, %v2920, 0.0
  %v3010 = vadd.f32 %v3008, %v3009
  %v3011 = vsel %vm199, %v2857, 0.0
  %v3012 = vadd.f32 %v3010, %v3011
  %v3013 = vsel %vm199, %v2921, 0.0
  %v3014 = vadd.f32 %v3012, %v3013
  %v3015 = vsel %vm199, %v2858, 0.0
  %v3016 = vadd.f32 %v3014, %v3015
  %v3017 = vsel %vm199, %v2922, 0.0
  %v3018 = vadd.f32 %v3016, %v3017
  %v3019 = vsel %vm199, %v2859, 0.0
  %v3020 = vadd.f32 %v3018, %v3019
  %v3021 = vsel %vm199, %v2923, 0.0
  %v3022 = vadd.f32 %v3020, %v3021
  %v3023 = vsel %vm199, %v2860, 0.0
  %v3024 = vadd.f32 %v3022, %v3023
  %v3025 = vsel %vm199, %v2924, 0.0
  %v3026 = vadd.f32 %v3024, %v3025
  %v3027 = vsel %vm199, %v2861, 0.0
  %v3028 = vadd.f32 %v3026, %v3027
  %v3029 = vsel %vm199, %v2925, 0.0
  %v3030 = vadd.f32 %v3028, %v3029
  %v3031 = vsel %vm199, %v2862, 0.0
  %v3032 = vadd.f32 %v3030, %v3031
  %v3033 = vsel %vm199, %v2926, 0.0
  %v3034 = vadd.f32 %v3032, %v3033
  %v3035 = vsel %vm199, %v2863, 0.0
  %v3036 = vadd.f32 %v3034, %v3035
  %v3037 = vsel %vm199, %v2927, 0.0
  %v3038 = vadd.f32 %v3036, %v3037
  %3039 = vadd.xlane.f32.xlu0 %v3038
  %v3040 = vpop.xlane.xlu0 %3039
  %v3041 = vsel %vm199, %v2864, 0.0
  %v3042 = vsel %vm199, %v2928, 0.0
  %v3043 = vadd.f32 %v3041, %v3042
  %v3044 = vsel %vm199, %v2865, 0.0
  %v3045 = vadd.f32 %v3043, %v3044
  %v3046 = vsel %vm199, %v2929, 0.0
  %v3047 = vadd.f32 %v3045, %v3046
  %v3048 = vsel %vm199, %v2866, 0.0
  %v3049 = vadd.f32 %v3047, %v3048
  %v3050 = vsel %vm199, %v2930, 0.0
  %v3051 = vadd.f32 %v3049, %v3050
  %v3052 = vsel %vm199, %v2867, 0.0
  %v3053 = vadd.f32 %v3051, %v3052
  %v3054 = vsel %vm199, %v2931, 0.0
  %v3055 = vadd.f32 %v3053, %v3054
  %v3056 = vsel %vm199, %v2868, 0.0
  %v3057 = vadd.f32 %v3055, %v3056
  %v3058 = vsel %vm199, %v2932, 0.0
  %v3059 = vadd.f32 %v3057, %v3058
  %v3060 = vsel %vm199, %v2869, 0.0
  %v3061 = vadd.f32 %v3059, %v3060
  %v3062 = vsel %vm199, %v2933, 0.0
  %v3063 = vadd.f32 %v3061, %v3062
  %v3064 = vsel %vm199, %v2870, 0.0
  %v3065 = vadd.f32 %v3063, %v3064
  %v3066 = vsel %vm199, %v2934, 0.0
  %v3067 = vadd.f32 %v3065, %v3066
  %v3068 = vsel %vm199, %v2871, 0.0
  %v3069 = vadd.f32 %v3067, %v3068
  %v3070 = vsel %vm199, %v2935, 0.0
  %v3071 = vadd.f32 %v3069, %v3070
  %v3072 = vsel %vm199, %v2872, 0.0
  %v3073 = vadd.f32 %v3071, %v3072
  %v3074 = vsel %vm199, %v2936, 0.0
  %v3075 = vadd.f32 %v3073, %v3074
  %v3076 = vsel %vm199, %v2873, 0.0
  %v3077 = vadd.f32 %v3075, %v3076
  %v3078 = vsel %vm199, %v2937, 0.0
  %v3079 = vadd.f32 %v3077, %v3078
  %v3080 = vsel %vm199, %v2874, 0.0
  %v3081 = vadd.f32 %v3079, %v3080
  %v3082 = vsel %vm199, %v2938, 0.0
  %v3083 = vadd.f32 %v3081, %v3082
  %v3084 = vsel %vm199, %v2875, 0.0
  %v3085 = vadd.f32 %v3083, %v3084
  %v3086 = vsel %vm199, %v2939, 0.0
  %v3087 = vadd.f32 %v3085, %v3086
  %v3088 = vsel %vm199, %v2876, 0.0
  %v3089 = vadd.f32 %v3087, %v3088
  %v3090 = vsel %vm199, %v2940, 0.0
  %v3091 = vadd.f32 %v3089, %v3090
  %v3092 = vsel %vm199, %v2877, 0.0
  %v3093 = vadd.f32 %v3091, %v3092
  %v3094 = vsel %vm199, %v2941, 0.0
  %v3095 = vadd.f32 %v3093, %v3094
  %v3096 = vsel %vm199, %v2878, 0.0
  %v3097 = vadd.f32 %v3095, %v3096
  %v3098 = vsel %vm199, %v2942, 0.0
  %v3099 = vadd.f32 %v3097, %v3098
  %v3100 = vsel %vm199, %v2879, 0.0
  %v3101 = vadd.f32 %v3099, %v3100
  %v3102 = vsel %vm199, %v2943, 0.0
  %v3103 = vadd.f32 %v3101, %v3102
  %3104 = vadd.xlane.f32.xlu0 %v3103
  %v3105 = vpop.xlane.xlu0 %3104
  %v3108 = vlaneseq
  %v3109 = vshrl.u32 %v3108, 7
  %v3110 = vsub.s32 %v2504, %v3109
  %v3111 = vrot.slane %v3040, %v3110
  %v3112 = vlaneseq
  %v3113 = vshrl.u32 %v3112, 7
  %v3114 = vsub.s32 %v2504, %v3113
  %v3115 = vrot.slane %v3105, %v3114
  %v3116 = vsel %vm2513, %v3115, %v3111
  %v3118 = vadd.f32 %v2519, %v3116
  %3119 = vst.msk [vmem:[%s3] sm:$0x3] %vm2517, %v3118
  %v3120 = vld [vmem:[%s4] sm:$0x3]
  %v3121 = vsel %vm199, %v2026, 0.0
  %v3122 = vsel %vm199, %v2027, 0.0
  %v3123 = vadd.f32 %v3121, %v3122
  %v3124 = vsel %vm199, %v2028, 0.0
  %v3125 = vadd.f32 %v3123, %v3124
  %v3126 = vsel %vm199, %v2029, 0.0
  %v3127 = vadd.f32 %v3125, %v3126
  %v3128 = vsel %vm199, %v2030, 0.0
  %v3129 = vadd.f32 %v3127, %v3128
  %v3130 = vsel %vm199, %v2031, 0.0
  %v3131 = vadd.f32 %v3129, %v3130
  %v3132 = vsel %vm199, %v2032, 0.0
  %v3133 = vadd.f32 %v3131, %v3132
  %v3134 = vsel %vm199, %v2033, 0.0
  %v3135 = vadd.f32 %v3133, %v3134
  %v3136 = vsel %vm199, %v2034, 0.0
  %v3137 = vadd.f32 %v3135, %v3136
  %v3138 = vsel %vm199, %v2035, 0.0
  %v3139 = vadd.f32 %v3137, %v3138
  %v3140 = vsel %vm199, %v2036, 0.0
  %v3141 = vadd.f32 %v3139, %v3140
  %v3142 = vsel %vm199, %v2037, 0.0
  %v3143 = vadd.f32 %v3141, %v3142
  %v3144 = vsel %vm199, %v2038, 0.0
  %v3145 = vadd.f32 %v3143, %v3144
  %v3146 = vsel %vm199, %v2039, 0.0
  %v3147 = vadd.f32 %v3145, %v3146
  %v3148 = vsel %vm199, %v2040, 0.0
  %v3149 = vadd.f32 %v3147, %v3148
  %v3150 = vsel %vm199, %v2041, 0.0
  %v3151 = vadd.f32 %v3149, %v3150
  %v3152 = vsel %vm199, %v2042, 0.0
  %v3153 = vadd.f32 %v3151, %v3152
  %v3154 = vsel %vm199, %v2043, 0.0
  %v3155 = vadd.f32 %v3153, %v3154
  %v3156 = vsel %vm199, %v2044, 0.0
  %v3157 = vadd.f32 %v3155, %v3156
  %v3158 = vsel %vm199, %v2045, 0.0
  %v3159 = vadd.f32 %v3157, %v3158
  %v3160 = vsel %vm199, %v2046, 0.0
  %v3161 = vadd.f32 %v3159, %v3160
  %v3162 = vsel %vm199, %v2047, 0.0
  %v3163 = vadd.f32 %v3161, %v3162
  %v3164 = vsel %vm199, %v2048, 0.0
  %v3165 = vadd.f32 %v3163, %v3164
  %v3166 = vsel %vm199, %v2049, 0.0
  %v3167 = vadd.f32 %v3165, %v3166
  %v3168 = vsel %vm199, %v2050, 0.0
  %v3169 = vadd.f32 %v3167, %v3168
  %v3170 = vsel %vm199, %v2051, 0.0
  %v3171 = vadd.f32 %v3169, %v3170
  %v3172 = vsel %vm199, %v2052, 0.0
  %v3173 = vadd.f32 %v3171, %v3172
  %v3174 = vsel %vm199, %v2053, 0.0
  %v3175 = vadd.f32 %v3173, %v3174
  %v3176 = vsel %vm199, %v2054, 0.0
  %v3177 = vadd.f32 %v3175, %v3176
  %v3178 = vsel %vm199, %v2055, 0.0
  %v3179 = vadd.f32 %v3177, %v3178
  %v3180 = vsel %vm199, %v2056, 0.0
  %v3181 = vadd.f32 %v3179, %v3180
  %v3182 = vsel %vm199, %v2057, 0.0
  %v3183 = vadd.f32 %v3181, %v3182
  %3184 = vadd.xlane.f32.xlu0 %v3183
  %v3185 = vpop.xlane.xlu0 %3184
  %v3186 = vsel %vm199, %v2058, 0.0
  %v3187 = vsel %vm199, %v2059, 0.0
  %v3188 = vadd.f32 %v3186, %v3187
  %v3189 = vsel %vm199, %v2060, 0.0
  %v3190 = vadd.f32 %v3188, %v3189
  %v3191 = vsel %vm199, %v2061, 0.0
  %v3192 = vadd.f32 %v3190, %v3191
  %v3193 = vsel %vm199, %v2062, 0.0
  %v3194 = vadd.f32 %v3192, %v3193
  %v3195 = vsel %vm199, %v2063, 0.0
  %v3196 = vadd.f32 %v3194, %v3195
  %v3197 = vsel %vm199, %v2064, 0.0
  %v3198 = vadd.f32 %v3196, %v3197
  %v3199 = vsel %vm199, %v2065, 0.0
  %v3200 = vadd.f32 %v3198, %v3199
  %v3201 = vsel %vm199, %v2066, 0.0
  %v3202 = vadd.f32 %v3200, %v3201
  %v3203 = vsel %vm199, %v2067, 0.0
  %v3204 = vadd.f32 %v3202, %v3203
  %v3205 = vsel %vm199, %v2068, 0.0
  %v3206 = vadd.f32 %v3204, %v3205
  %v3207 = vsel %vm199, %v2069, 0.0
  %v3208 = vadd.f32 %v3206, %v3207
  %v3209 = vsel %vm199, %v2070, 0.0
  %v3210 = vadd.f32 %v3208, %v3209
  %v3211 = vsel %vm199, %v2071, 0.0
  %v3212 = vadd.f32 %v3210, %v3211
  %v3213 = vsel %vm199, %v2072, 0.0
  %v3214 = vadd.f32 %v3212, %v3213
  %v3215 = vsel %vm199, %v2073, 0.0
  %v3216 = vadd.f32 %v3214, %v3215
  %v3217 = vsel %vm199, %v2074, 0.0
  %v3218 = vadd.f32 %v3216, %v3217
  %v3219 = vsel %vm199, %v2075, 0.0
  %v3220 = vadd.f32 %v3218, %v3219
  %v3221 = vsel %vm199, %v2076, 0.0
  %v3222 = vadd.f32 %v3220, %v3221
  %v3223 = vsel %vm199, %v2077, 0.0
  %v3224 = vadd.f32 %v3222, %v3223
  %v3225 = vsel %vm199, %v2078, 0.0
  %v3226 = vadd.f32 %v3224, %v3225
  %v3227 = vsel %vm199, %v2079, 0.0
  %v3228 = vadd.f32 %v3226, %v3227
  %v3229 = vsel %vm199, %v2080, 0.0
  %v3230 = vadd.f32 %v3228, %v3229
  %v3231 = vsel %vm199, %v2081, 0.0
  %v3232 = vadd.f32 %v3230, %v3231
  %v3233 = vsel %vm199, %v2082, 0.0
  %v3234 = vadd.f32 %v3232, %v3233
  %v3235 = vsel %vm199, %v2083, 0.0
  %v3236 = vadd.f32 %v3234, %v3235
  %v3237 = vsel %vm199, %v2084, 0.0
  %v3238 = vadd.f32 %v3236, %v3237
  %v3239 = vsel %vm199, %v2085, 0.0
  %v3240 = vadd.f32 %v3238, %v3239
  %v3241 = vsel %vm199, %v2086, 0.0
  %v3242 = vadd.f32 %v3240, %v3241
  %v3243 = vsel %vm199, %v2087, 0.0
  %v3244 = vadd.f32 %v3242, %v3243
  %v3245 = vsel %vm199, %v2088, 0.0
  %v3246 = vadd.f32 %v3244, %v3245
  %v3247 = vsel %vm199, %v2089, 0.0
  %v3248 = vadd.f32 %v3246, %v3247
  %3249 = vadd.xlane.f32.xlu0 %v3248
  %v3250 = vpop.xlane.xlu0 %3249
  %v3253 = vlaneseq
  %v3254 = vshrl.u32 %v3253, 7
  %v3255 = vsub.s32 %v2504, %v3254
  %v3256 = vrot.slane %v3185, %v3255
  %v3257 = vlaneseq
  %v3258 = vshrl.u32 %v3257, 7
  %v3259 = vsub.s32 %v2504, %v3258
  %v3260 = vrot.slane %v3250, %v3259
  %v3261 = vsel %vm2513, %v3260, %v3256
  %v3263 = vadd.f32 %v3120, %v3261
  %3264 = vst.msk [vmem:[%s4] sm:$0x3] %vm2517, %v3263
  // Predicated region
  $region14: #{dice_loss_from_labels.1} parent=0 // pred_check
    _
  $region15: #{dice_loss_from_labels.1} parent=0 // pred_check_branch
    %3266 = sbr.rel (0) target = $region17
  $region16: #{dice_loss_from_labels.1} parent=0 // pred_region
    _
  $region17: #{dice_loss_from_labels.1} parent=0 // pred_fallthru
    _
  // Predicated region
  $region18: #{dice_loss_from_labels.1} parent=0 // pred_check
    _
  $region19: #{dice_loss_from_labels.1} parent=0 // pred_check_branch
    %3268 = sbr.rel (0) target = $region21
  $region20: #{dice_loss_from_labels.1} parent=0 // pred_region
    _
  $region21: #{dice_loss_from_labels.1} parent=0 // pred_fallthru
    _
  // Predicated region
  $region22: #{dice_loss_from_labels.1} parent=0 // pred_check
    _
  $region23: #{dice_loss_from_labels.1} parent=0 // pred_check_branch
    %3270 = sbr.rel (0) target = $region25
  $region24: #{dice_loss_from_labels.1} parent=0 // pred_region
    _
  $region25: #{dice_loss_from_labels.1} parent=0 // pred_fallthru
    _
  // Predicated region
  $region26: #{dice_loss_from_labels.1} parent=0 // pred_check
    _
  $region27: #{dice_loss_from_labels.1} parent=0 // pred_check_branch
    %3272 = sbr.rel (0) target = $region29
  $region28: #{dice_loss_from_labels.1} parent=0 // pred_region
    _
  $region29: #{dice_loss_from_labels.1} parent=0 // pred_fallthru
    _
  // Predicated region
  $region30: #{dice_loss_from_labels.1} parent=0 // pred_check
    _
  $region31: #{dice_loss_from_labels.1} parent=0 // pred_check_branch
    %3274 = sbr.rel (0) target = $region33
  $region32: #{dice_loss_from_labels.1} parent=0 // pred_region
    _
  $region33: #{dice_loss_from_labels.1} parent=0 // pred_fallthru
    _
  // Predicated region
  $region34: #{dice_loss_from_labels.1} parent=0 // pred_check
    _
  $region35: #{dice_loss_from_labels.1} parent=0 // pred_check_branch
    %3276 = sbr.rel (0) target = $region37
  $region36: #{dice_loss_from_labels.1} parent=0 // pred_region
    _
  $region37: #{dice_loss_from_labels.1} parent=0 // pred_fallthru
    _

</llo_original>
